<compile_context>
chip_gen: v5e
topology: v5e:2x2
jax: 0.10.0
libtpu: 0.0.40
codegen_flags: <defaults>
</compile_context>

<pallas_src>
import functools

import jax
import jax.numpy as jnp
from jax.experimental import pallas as pl
from jax.experimental.pallas import tpu as pltpu


def _deconv_phase_kernel(x_ref, w_ref, b_ref, o_ref, *, phase_taps, hwp,
                         negative_slope):
    # x_ref: (1, Cin, Lflat)         flattened padded input image (compute dtype)
    # w_ref: (T, cout_blk, Cin)      per-tap weight matrices (compute dtype)
    # b_ref: (cout_blk, 1)           bias, f32
    # o_ref: (1, s*s, cout_blk, hwp) phase-major, lane-dense output
    bias = b_ref[...]                                     # (cout_blk, 1) f32
    for ph, taps in enumerate(phase_taps):
        acc = None
        for tap_idx, off in taps:                         # static python ints
            xw = x_ref[0, :, pl.ds(off, hwp)]             # (Cin, H*Wp)
            y = jnp.dot(w_ref[tap_idx], xw,
                        preferred_element_type=jnp.float32)
            acc = y if acc is None else acc + y
        acc = acc + bias                                  # f32 epilogue
        acc = jnp.where(acc >= 0, acc, negative_slope * acc)
        o_ref[0, ph] = acc.astype(o_ref.dtype)


@functools.partial(
    jax.jit,
    static_argnames=("stride", "padding", "negative_slope", "compute_dtype",
                     "cout_block"))
def deconv_block_forward(x, w, b, *, stride, padding, negative_slope=0.01,
                         compute_dtype=jnp.bfloat16, cout_block=None):
    """ConvTranspose2d(x; w, b, stride, padding) followed by LeakyReLU.

    x: (N, Cin, H, W)    NCHW
    w: (Cin, Cout, K, K) PyTorch ConvTranspose2d weight layout
    b: (Cout,)
    returns: (N, Cout, OH, OW) NCHW
    """
    N, Cin, H, W = x.shape
    Cin_w, Cout, K, Kw = w.shape
    assert Cin == Cin_w and K == Kw
    s, p = int(stride), int(padding)
    OH = (H - 1) * s - 2 * p + K
    OW = (W - 1) * s - 2 * p + K
    assert K == s + 2 * p, (
        "phase-decomposed fast path requires K == stride + 2*padding")
    assert OH == H * s and OW == W * s

    # ---- static phase / tap metadata (pure python, trace time) ----------
    def _phase_params(r):
        q = (r + p) % s                   # kernel-tap residue for this phase
        d = (r + p) // s                  # input-index offset for this phase
        nt = -(-(K - q) // s)             # number of taps (ceil)
        return q, d, nt

    pad_lo, pad_hi = 0, 0
    for r in range(s):
        q, d, nt = _phase_params(r)
        pad_lo = max(pad_lo, nt - 1 - d)
        pad_hi = max(pad_hi, d)
    pad_top, pad_bot = pad_lo, pad_hi     # same kernel/stride/pad both dims
    pad_left, pad_right = pad_lo, pad_hi

    Hp = H + pad_top + pad_bot
    Wp = W + pad_left + pad_right
    HWp = H * Wp

    # Padded input, flattened per channel.  One extra bottom row guards the
    # (discarded) per-row overhang columns of the last row's windows.
    xpad = jnp.pad(x, ((0, 0), (0, 0),
                       (pad_top, pad_bot + 1), (pad_left, pad_right)))
    Lflat = (Hp + 1) * Wp
    xflat = xpad.reshape(N, Cin, Lflat).astype(compute_dtype)

    # Per-(phase, tap) weight matrices (Cout, Cin) + static flat offsets.
    w_oikk = jnp.transpose(w, (1, 0, 2, 3))               # (Cout, Cin, K, K)
    phase_taps = []
    wt_list = []
    for rh in range(s):
        qh, dh, nth = _phase_params(rh)
        for rw in range(s):
            qw, dw, ntw = _phase_params(rw)
            taps = []
            for th in range(nth):
                for tw in range(ntw):
                    kh = qh + th * s
                    kw = qw + tw * s
                    roff = dh - th + pad_top
                    coff = dw - tw + pad_left
                    taps.append((len(wt_list), roff * Wp + coff))
                    wt_list.append(w_oikk[:, :, kh, kw])  # (Cout, Cin)
            phase_taps.append(tuple(taps))
    w_taps = jnp.stack(wt_list, axis=0).astype(compute_dtype)  # (T, Cout, Cin)
    T = w_taps.shape[0]
    bias = b.reshape(Cout, 1).astype(jnp.float32)

    # Cout tiling (only kicks in for large channel counts).
    if cout_block is None:
        cout_block = Cout if (Cout <= 128 or Cout % 128 != 0) else 128
    assert Cout % cout_block == 0
    n_cout = Cout // cout_block

    kernel = functools.partial(
        _deconv_phase_kernel,
        phase_taps=tuple(phase_taps),
        hwp=HWp,
        negative_slope=float(negative_slope))

    out = pl.pallas_call(
        kernel,
        out_shape=jax.ShapeDtypeStruct((N, s * s, Cout, HWp), x.dtype),
        grid_spec=pltpu.PrefetchScalarGridSpec(
            num_scalar_prefetch=0,
            grid=(N, n_cout),
            in_specs=[
                pl.BlockSpec((1, Cin, Lflat), lambda n, c: (n, 0, 0)),
                pl.BlockSpec((T, cout_block, Cin), lambda n, c: (0, c, 0)),
                pl.BlockSpec((cout_block, 1), lambda n, c: (c, 0)),
            ],
            out_specs=pl.BlockSpec((1, s * s, cout_block, HWp),
                                   lambda n, c: (n, 0, c, 0)),
        ),
        compiler_params=pltpu.CompilerParams(
            dimension_semantics=("parallel", "parallel")),
    )(xflat, w_taps, bias)

    # Single fused pass: drop the per-row overhang columns and depth-to-space
    # interleave the s*s phases into NCHW.
    out = out.reshape(N, s, s, Cout, H, Wp)[..., :W]      # (N, s, s, Cout, H, W)
    out = jnp.transpose(out, (0, 3, 4, 1, 5, 2))          # (N, Cout, H, s, W, s)
    return out.reshape(N, Cout, OH, OW)


def _reference(x, w, b, *, stride, padding, negative_slope=0.01):
    """Pure-JAX reference for ConvTranspose2d + LeakyReLU (PyTorch semantics)."""
    Cin, Cout, K, _ = w.shape
    w_conv = jnp.transpose(w[:, :, ::-1, ::-1], (1, 0, 2, 3))   # (Cout, Cin, K, K)
    y = jax.lax.conv_general_dilated(
        x, w_conv,
        window_strides=(1, 1),
        padding=[(K - 1 - padding, K - 1 - padding)] * 2,
        lhs_dilation=(stride, stride),
        dimension_numbers=("NCHW", "OIHW", "NCHW"))
    y = y + b.reshape(1, -1, 1, 1)
    return jnp.where(y >= 0, y, negative_slope * y)


if __name__ == "__main__":
    # DeconvBlock(input_size=4, output_size=8, kernel_size=4, stride=2, padding=1)
    N, Cin, H, W = 2, 4, 16, 16
    Cout, K, stride, padding = 8, 4, 2, 1

    key = jax.random.PRNGKey(0)
    kx, kw, kb = jax.random.split(key, 3)
    x = jax.random.normal(kx, (N, Cin, H, W), dtype=jnp.float32)
    # PyTorch ConvTranspose2d weight layout: (in_channels, out_channels, kH, kW)
    fan = Cin * K * K
    bound = 1.0 / (fan ** 0.5)
    w = jax.random.uniform(kw, (Cin, Cout, K, K), jnp.float32, -bound, bound)
    b = jax.random.uniform(kb, (Cout,), jnp.float32, -bound, bound)

    ref = _reference(x, w, b, stride=stride, padding=padding)

    # f32-input MXU path: tight tolerance.
    out_f32 = jax.block_until_ready(
        deconv_block_forward(x, w, b, stride=stride, padding=padding,
                             compute_dtype=jnp.float32))
    assert out_f32.shape == (N, Cout, (H - 1) * stride - 2 * padding + K,
                             (W - 1) * stride - 2 * padding + K)
    assert jnp.allclose(out_f32, ref, atol=1e-4, rtol=1e-4), (
        f"f32 max abs err {jnp.max(jnp.abs(out_f32 - ref))}")

    # bf16-input / f32-accumulate path (v6e/v7x native MXU rate).
    out_bf16 = jax.block_until_ready(
        deconv_block_forward(x, w, b, stride=stride, padding=padding,
                             compute_dtype=jnp.bfloat16))
    assert jnp.allclose(out_bf16, ref, atol=5e-2, rtol=5e-2), (
        f"bf16 max abs err {jnp.max(jnp.abs(out_bf16 - ref))}")

    print("KERNEL_OK")
</pallas_src>

<mosaic_0001>
module attributes {stable_mosaic.version = 11 : i64} {
  func.func @_deconv_phase_kernel(%arg0: i32, %arg1: i32, %arg2: memref<1x4x342xf32, #tpu.memory_space<vmem>>, %arg3: memref<16x8x4xf32, #tpu.memory_space<vmem>>, %arg4: memref<8x1xf32, #tpu.memory_space<vmem>>, %arg5: memref<1x4x8x288xf32, #tpu.memory_space<vmem>>) attributes {dimension_semantics = [#tpu.dimension_semantics<parallel>, #tpu.dimension_semantics<parallel>], iteration_bounds = array<i64: 2, 1>, scalar_prefetch = 0 : i64, scratch_operands = 0 : i64, tpu.core_type = #tpu.core_type<tc>, window_params = [{transform_indices = @transform_0, window_bounds = array<i64: 1, 4, 342>}, {transform_indices = @transform_1, window_bounds = array<i64: 16, 8, 4>}, {transform_indices = @transform_2, window_bounds = array<i64: 8, 1>}, {transform_indices = @transform_3, window_bounds = array<i64: 1, 4, 8, 288>}]} {
    %c0 = arith.constant 0 : index
    %c0_0 = arith.constant 0 : index
    %0 = vector.load %arg4[%c0, %c0_0] : memref<8x1xf32, #tpu.memory_space<vmem>>, vector<8x1xf32>
    %c0_1 = arith.constant 0 : index
    %c0_2 = arith.constant 0 : index
    %c19 = arith.constant 19 : index
    %1 = vector.load %arg2[%c0_1, %c0_2, %c19] : memref<1x4x342xf32, #tpu.memory_space<vmem>>, vector<1x4x288xf32>
    %2 = vector.shape_cast %1 : vector<1x4x288xf32> to vector<4x288xf32>
    %c0_3 = arith.constant 0 : index
    %c0_4 = arith.constant 0 : index
    %c0_5 = arith.constant 0 : index
    %3 = vector.load %arg3[%c0_3, %c0_4, %c0_5] : memref<16x8x4xf32, #tpu.memory_space<vmem>>, vector<1x8x4xf32>
    %4 = vector.shape_cast %3 : vector<1x8x4xf32> to vector<8x4xf32>
    %cst = arith.constant dense<0.000000e+00> : vector<8x288xf32>
    %5 = tpu.matmul %4, %2, %cst {dimension_numbers = #tpu.dot_dimension_numbers<[1], [0], [0], [1], [0, 0, 1, 1], [], []>} : vector<8x4xf32>, vector<4x288xf32>, vector<8x288xf32> -> vector<8x288xf32>
    %c0_6 = arith.constant 0 : index
    %c0_7 = arith.constant 0 : index
    %c18 = arith.constant 18 : index
    %6 = vector.load %arg2[%c0_6, %c0_7, %c18] : memref<1x4x342xf32, #tpu.memory_space<vmem>>, vector<1x4x288xf32>
    %7 = vector.shape_cast %6 : vector<1x4x288xf32> to vector<4x288xf32>
    %c1 = arith.constant 1 : index
    %c0_8 = arith.constant 0 : index
    %c0_9 = arith.constant 0 : index
    %8 = vector.load %arg3[%c1, %c0_8, %c0_9] : memref<16x8x4xf32, #tpu.memory_space<vmem>>, vector<1x8x4xf32>
    %9 = vector.shape_cast %8 : vector<1x8x4xf32> to vector<8x4xf32>
    %cst_10 = arith.constant dense<0.000000e+00> : vector<8x288xf32>
    %10 = tpu.matmul %9, %7, %cst_10 {dimension_numbers = #tpu.dot_dimension_numbers<[1], [0], [0], [1], [0, 0, 1, 1], [], []>} : vector<8x4xf32>, vector<4x288xf32>, vector<8x288xf32> -> vector<8x288xf32>
    %11 = arith.addf %5, %10 : vector<8x288xf32>
    %c0_11 = arith.constant 0 : index
    %c0_12 = arith.constant 0 : index
    %c1_13 = arith.constant 1 : index
    %12 = vector.load %arg2[%c0_11, %c0_12, %c1_13] : memref<1x4x342xf32, #tpu.memory_space<vmem>>, vector<1x4x288xf32>
    %13 = vector.shape_cast %12 : vector<1x4x288xf32> to vector<4x288xf32>
    %c2 = arith.constant 2 : index
    %c0_14 = arith.constant 0 : index
    %c0_15 = arith.constant 0 : index
    %14 = vector.load %arg3[%c2, %c0_14, %c0_15] : memref<16x8x4xf32, #tpu.memory_space<vmem>>, vector<1x8x4xf32>
    %15 = vector.shape_cast %14 : vector<1x8x4xf32> to vector<8x4xf32>
    %cst_16 = arith.constant dense<0.000000e+00> : vector<8x288xf32>
    %16 = tpu.matmul %15, %13, %cst_16 {dimension_numbers = #tpu.dot_dimension_numbers<[1], [0], [0], [1], [0, 0, 1, 1], [], []>} : vector<8x4xf32>, vector<4x288xf32>, vector<8x288xf32> -> vector<8x288xf32>
    %17 = arith.addf %11, %16 : vector<8x288xf32>
    %c0_17 = arith.constant 0 : index
    %c0_18 = arith.constant 0 : index
    %c0_19 = arith.constant 0 : index
    %18 = vector.load %arg2[%c0_17, %c0_18, %c0_19] : memref<1x4x342xf32, #tpu.memory_space<vmem>>, vector<1x4x288xf32>
    %19 = vector.shape_cast %18 : vector<1x4x288xf32> to vector<4x288xf32>
    %c3 = arith.constant 3 : index
    %c0_20 = arith.constant 0 : index
    %c0_21 = arith.constant 0 : index
    %20 = vector.load %arg3[%c3, %c0_20, %c0_21] : memref<16x8x4xf32, #tpu.memory_space<vmem>>, vector<1x8x4xf32>
    %21 = vector.shape_cast %20 : vector<1x8x4xf32> to vector<8x4xf32>
    %cst_22 = arith.constant dense<0.000000e+00> : vector<8x288xf32>
    %22 = tpu.matmul %21, %19, %cst_22 {dimension_numbers = #tpu.dot_dimension_numbers<[1], [0], [0], [1], [0, 0, 1, 1], [], []>} : vector<8x4xf32>, vector<4x288xf32>, vector<8x288xf32> -> vector<8x288xf32>
    %23 = arith.addf %17, %22 : vector<8x288xf32>
    %24 = vector.broadcast %0 : vector<8x1xf32> to vector<8x288xf32>
    %25 = arith.addf %23, %24 : vector<8x288xf32>
    %cst_23 = arith.constant 0.000000e+00 : f32
    %26 = vector.broadcast %cst_23 : f32 to vector<8x288xf32>
    %27 = arith.cmpf oge, %25, %26 : vector<8x288xf32>
    %cst_24 = arith.constant 0.00999999977 : f32
    %28 = vector.broadcast %cst_24 : f32 to vector<8x288xf32>
    %29 = arith.mulf %28, %25 : vector<8x288xf32>
    %30 = arith.select %27, %25, %29 : vector<8x288xi1>, vector<8x288xf32>
    %c0_25 = arith.constant 0 : index
    %c0_26 = arith.constant 0 : index
    %c0_27 = arith.constant 0 : index
    %c0_28 = arith.constant 0 : index
    %31 = vector.load %arg5[%c0_25, %c0_26, %c0_27, %c0_28] : memref<1x4x8x288xf32, #tpu.memory_space<vmem>>, vector<1x1x8x288xf32>
    %32 = vector.shape_cast %31 : vector<1x1x8x288xf32> to vector<8x288xf32>
    %33 = vector.shape_cast %30 : vector<8x288xf32> to vector<1x1x8x288xf32>
    tpu.vector_store %arg5[%c0_25, %c0_26, %c0_27, %c0_28], %33 {strides = array<i32>} : memref<1x4x8x288xf32, #tpu.memory_space<vmem>>, vector<1x1x8x288xf32>,
    %c0_29 = arith.constant 0 : index
    %c0_30 = arith.constant 0 : index
    %c20 = arith.constant 20 : index
    %34 = vector.load %arg2[%c0_29, %c0_30, %c20] : memref<1x4x342xf32, #tpu.memory_space<vmem>>, vector<1x4x288xf32>
    %35 = vector.shape_cast %34 : vector<1x4x288xf32> to vector<4x288xf32>
    %c4 = arith.constant 4 : index
    %c0_31 = arith.constant 0 : index
    %c0_32 = arith.constant 0 : index
    %36 = vector.load %arg3[%c4, %c0_31, %c0_32] : memref<16x8x4xf32, #tpu.memory_space<vmem>>, vector<1x8x4xf32>
    %37 = vector.shape_cast %36 : vector<1x8x4xf32> to vector<8x4xf32>
    %cst_33 = arith.constant dense<0.000000e+00> : vector<8x288xf32>
    %38 = tpu.matmul %37, %35, %cst_33 {dimension_numbers = #tpu.dot_dimension_numbers<[1], [0], [0], [1], [0, 0, 1, 1], [], []>} : vector<8x4xf32>, vector<4x288xf32>, vector<8x288xf32> -> vector<8x288xf32>
    %c0_34 = arith.constant 0 : index
    %c0_35 = arith.constant 0 : index
    %c19_36 = arith.constant 19 : index
    %39 = vector.load %arg2[%c0_34, %c0_35, %c19_36] : memref<1x4x342xf32, #tpu.memory_space<vmem>>, vector<1x4x288xf32>
    %40 = vector.shape_cast %39 : vector<1x4x288xf32> to vector<4x288xf32>
    %c5 = arith.constant 5 : index
    %c0_37 = arith.constant 0 : index
    %c0_38 = arith.constant 0 : index
    %41 = vector.load %arg3[%c5, %c0_37, %c0_38] : memref<16x8x4xf32, #tpu.memory_space<vmem>>, vector<1x8x4xf32>
    %42 = vector.shape_cast %41 : vector<1x8x4xf32> to vector<8x4xf32>
    %cst_39 = arith.constant dense<0.000000e+00> : vector<8x288xf32>
    %43 = tpu.matmul %42, %40, %cst_39 {dimension_numbers = #tpu.dot_dimension_numbers<[1], [0], [0], [1], [0, 0, 1, 1], [], []>} : vector<8x4xf32>, vector<4x288xf32>, vector<8x288xf32> -> vector<8x288xf32>
    %44 = arith.addf %38, %43 : vector<8x288xf32>
    %c0_40 = arith.constant 0 : index
    %c0_41 = arith.constant 0 : index
    %c2_42 = arith.constant 2 : index
    %45 = vector.load %arg2[%c0_40, %c0_41, %c2_42] : memref<1x4x342xf32, #tpu.memory_space<vmem>>, vector<1x4x288xf32>
    %46 = vector.shape_cast %45 : vector<1x4x288xf32> to vector<4x288xf32>
    %c6 = arith.constant 6 : index
    %c0_43 = arith.constant 0 : index
    %c0_44 = arith.constant 0 : index
    %47 = vector.load %arg3[%c6, %c0_43, %c0_44] : memref<16x8x4xf32, #tpu.memory_space<vmem>>, vector<1x8x4xf32>
    %48 = vector.shape_cast %47 : vector<1x8x4xf32> to vector<8x4xf32>
    %cst_45 = arith.constant dense<0.000000e+00> : vector<8x288xf32>
    %49 = tpu.matmul %48, %46, %cst_45 {dimension_numbers = #tpu.dot_dimension_numbers<[1], [0], [0], [1], [0, 0, 1, 1], [], []>} : vector<8x4xf32>, vector<4x288xf32>, vector<8x288xf32> -> vector<8x288xf32>
    %50 = arith.addf %44, %49 : vector<8x288xf32>
    %c0_46 = arith.constant 0 : index
    %c0_47 = arith.constant 0 : index
    %c1_48 = arith.constant 1 : index
    %51 = vector.load %arg2[%c0_46, %c0_47, %c1_48] : memref<1x4x342xf32, #tpu.memory_space<vmem>>, vector<1x4x288xf32>
    %52 = vector.shape_cast %51 : vector<1x4x288xf32> to vector<4x288xf32>
    %c7 = arith.constant 7 : index
    %c0_49 = arith.constant 0 : index
    %c0_50 = arith.constant 0 : index
    %53 = vector.load %arg3[%c7, %c0_49, %c0_50] : memref<16x8x4xf32, #tpu.memory_space<vmem>>, vector<1x8x4xf32>
    %54 = vector.shape_cast %53 : vector<1x8x4xf32> to vector<8x4xf32>
    %cst_51 = arith.constant dense<0.000000e+00> : vector<8x288xf32>
    %55 = tpu.matmul %54, %52, %cst_51 {dimension_numbers = #tpu.dot_dimension_numbers<[1], [0], [0], [1], [0, 0, 1, 1], [], []>} : vector<8x4xf32>, vector<4x288xf32>, vector<8x288xf32> -> vector<8x288xf32>
    %56 = arith.addf %50, %55 : vector<8x288xf32>
    %57 = vector.broadcast %0 : vector<8x1xf32> to vector<8x288xf32>
    %58 = arith.addf %56, %57 : vector<8x288xf32>
    %cst_52 = arith.constant 0.000000e+00 : f32
    %59 = vector.broadcast %cst_52 : f32 to vector<8x288xf32>
    %60 = arith.cmpf oge, %58, %59 : vector<8x288xf32>
    %cst_53 = arith.constant 0.00999999977 : f32
    %61 = vector.broadcast %cst_53 : f32 to vector<8x288xf32>
    %62 = arith.mulf %61, %58 : vector<8x288xf32>
    %63 = arith.select %60, %58, %62 : vector<8x288xi1>, vector<8x288xf32>
    %c0_54 = arith.constant 0 : index
    %c1_55 = arith.constant 1 : index
    %c0_56 = arith.constant 0 : index
    %c0_57 = arith.constant 0 : index
    %64 = vector.load %arg5[%c0_54, %c1_55, %c0_56, %c0_57] : memref<1x4x8x288xf32, #tpu.memory_space<vmem>>, vector<1x1x8x288xf32>
    %65 = vector.shape_cast %64 : vector<1x1x8x288xf32> to vector<8x288xf32>
    %66 = vector.shape_cast %63 : vector<8x288xf32> to vector<1x1x8x288xf32>
    tpu.vector_store %arg5[%c0_54, %c1_55, %c0_56, %c0_57], %66 {strides = array<i32>} : memref<1x4x8x288xf32, #tpu.memory_space<vmem>>, vector<1x1x8x288xf32>,
    %c0_58 = arith.constant 0 : index
    %c0_59 = arith.constant 0 : index
    %c37 = arith.constant 37 : index
    %67 = vector.load %arg2[%c0_58, %c0_59, %c37] : memref<1x4x342xf32, #tpu.memory_space<vmem>>, vector<1x4x288xf32>
    %68 = vector.shape_cast %67 : vector<1x4x288xf32> to vector<4x288xf32>
    %c8 = arith.constant 8 : index
    %c0_60 = arith.constant 0 : index
    %c0_61 = arith.constant 0 : index
    %69 = vector.load %arg3[%c8, %c0_60, %c0_61] : memref<16x8x4xf32, #tpu.memory_space<vmem>>, vector<1x8x4xf32>
    %70 = vector.shape_cast %69 : vector<1x8x4xf32> to vector<8x4xf32>
    %cst_62 = arith.constant dense<0.000000e+00> : vector<8x288xf32>
    %71 = tpu.matmul %70, %68, %cst_62 {dimension_numbers = #tpu.dot_dimension_numbers<[1], [0], [0], [1], [0, 0, 1, 1], [], []>} : vector<8x4xf32>, vector<4x288xf32>, vector<8x288xf32> -> vector<8x288xf32>
    %c0_63 = arith.constant 0 : index
    %c0_64 = arith.constant 0 : index
    %c36 = arith.constant 36 : index
    %72 = vector.load %arg2[%c0_63, %c0_64, %c36] : memref<1x4x342xf32, #tpu.memory_space<vmem>>, vector<1x4x288xf32>
    %73 = vector.shape_cast %72 : vector<1x4x288xf32> to vector<4x288xf32>
    %c9 = arith.constant 9 : index
    %c0_65 = arith.constant 0 : index
    %c0_66 = arith.constant 0 : index
    %74 = vector.load %arg3[%c9, %c0_65, %c0_66] : memref<16x8x4xf32, #tpu.memory_space<vmem>>, vector<1x8x4xf32>
    %75 = vector.shape_cast %74 : vector<1x8x4xf32> to vector<8x4xf32>
    %cst_67 = arith.constant dense<0.000000e+00> : vector<8x288xf32>
    %76 = tpu.matmul %75, %73, %cst_67 {dimension_numbers = #tpu.dot_dimension_numbers<[1], [0], [0], [1], [0, 0, 1, 1], [], []>} : vector<8x4xf32>, vector<4x288xf32>, vector<8x288xf32> -> vector<8x288xf32>
    %77 = arith.addf %71, %76 : vector<8x288xf32>
    %c0_68 = arith.constant 0 : index
    %c0_69 = arith.constant 0 : index
    %c19_70 = arith.constant 19 : index
    %78 = vector.load %arg2[%c0_68, %c0_69, %c19_70] : memref<1x4x342xf32, #tpu.memory_space<vmem>>, vector<1x4x288xf32>
    %79 = vector.shape_cast %78 : vector<1x4x288xf32> to vector<4x288xf32>
    %c10 = arith.constant 10 : index
    %c0_71 = arith.constant 0 : index
    %c0_72 = arith.constant 0 : index
    %80 = vector.load %arg3[%c10, %c0_71, %c0_72] : memref<16x8x4xf32, #tpu.memory_space<vmem>>, vector<1x8x4xf32>
    %81 = vector.shape_cast %80 : vector<1x8x4xf32> to vector<8x4xf32>
    %cst_73 = arith.constant dense<0.000000e+00> : vector<8x288xf32>
    %82 = tpu.matmul %81, %79, %cst_73 {dimension_numbers = #tpu.dot_dimension_numbers<[1], [0], [0], [1], [0, 0, 1, 1], [], []>} : vector<8x4xf32>, vector<4x288xf32>, vector<8x288xf32> -> vector<8x288xf32>
    %83 = arith.addf %77, %82 : vector<8x288xf32>
    %c0_74 = arith.constant 0 : index
    %c0_75 = arith.constant 0 : index
    %c18_76 = arith.constant 18 : index
    %84 = vector.load %arg2[%c0_74, %c0_75, %c18_76] : memref<1x4x342xf32, #tpu.memory_space<vmem>>, vector<1x4x288xf32>
    %85 = vector.shape_cast %84 : vector<1x4x288xf32> to vector<4x288xf32>
    %c11 = arith.constant 11 : index
    %c0_77 = arith.constant 0 : index
    %c0_78 = arith.constant 0 : index
    %86 = vector.load %arg3[%c11, %c0_77, %c0_78] : memref<16x8x4xf32, #tpu.memory_space<vmem>>, vector<1x8x4xf32>
    %87 = vector.shape_cast %86 : vector<1x8x4xf32> to vector<8x4xf32>
    %cst_79 = arith.constant dense<0.000000e+00> : vector<8x288xf32>
    %88 = tpu.matmul %87, %85, %cst_79 {dimension_numbers = #tpu.dot_dimension_numbers<[1], [0], [0], [1], [0, 0, 1, 1], [], []>} : vector<8x4xf32>, vector<4x288xf32>, vector<8x288xf32> -> vector<8x288xf32>
    %89 = arith.addf %83, %88 : vector<8x288xf32>
    %90 = vector.broadcast %0 : vector<8x1xf32> to vector<8x288xf32>
    %91 = arith.addf %89, %90 : vector<8x288xf32>
    %cst_80 = arith.constant 0.000000e+00 : f32
    %92 = vector.broadcast %cst_80 : f32 to vector<8x288xf32>
    %93 = arith.cmpf oge, %91, %92 : vector<8x288xf32>
    %cst_81 = arith.constant 0.00999999977 : f32
    %94 = vector.broadcast %cst_81 : f32 to vector<8x288xf32>
    %95 = arith.mulf %94, %91 : vector<8x288xf32>
    %96 = arith.select %93, %91, %95 : vector<8x288xi1>, vector<8x288xf32>
    %c0_82 = arith.constant 0 : index
    %c2_83 = arith.constant 2 : index
    %c0_84 = arith.constant 0 : index
    %c0_85 = arith.constant 0 : index
    %97 = vector.load %arg5[%c0_82, %c2_83, %c0_84, %c0_85] : memref<1x4x8x288xf32, #tpu.memory_space<vmem>>, vector<1x1x8x288xf32>
    %98 = vector.shape_cast %97 : vector<1x1x8x288xf32> to vector<8x288xf32>
    %99 = vector.shape_cast %96 : vector<8x288xf32> to vector<1x1x8x288xf32>
    tpu.vector_store %arg5[%c0_82, %c2_83, %c0_84, %c0_85], %99 {strides = array<i32>} : memref<1x4x8x288xf32, #tpu.memory_space<vmem>>, vector<1x1x8x288xf32>,
    %c0_86 = arith.constant 0 : index
    %c0_87 = arith.constant 0 : index
    %c38 = arith.constant 38 : index
    %100 = vector.load %arg2[%c0_86, %c0_87, %c38] : memref<1x4x342xf32, #tpu.memory_space<vmem>>, vector<1x4x288xf32>
    %101 = vector.shape_cast %100 : vector<1x4x288xf32> to vector<4x288xf32>
    %c12 = arith.constant 12 : index
    %c0_88 = arith.constant 0 : index
    %c0_89 = arith.constant 0 : index
    %102 = vector.load %arg3[%c12, %c0_88, %c0_89] : memref<16x8x4xf32, #tpu.memory_space<vmem>>, vector<1x8x4xf32>
    %103 = vector.shape_cast %102 : vector<1x8x4xf32> to vector<8x4xf32>
    %cst_90 = arith.constant dense<0.000000e+00> : vector<8x288xf32>
    %104 = tpu.matmul %103, %101, %cst_90 {dimension_numbers = #tpu.dot_dimension_numbers<[1], [0], [0], [1], [0, 0, 1, 1], [], []>} : vector<8x4xf32>, vector<4x288xf32>, vector<8x288xf32> -> vector<8x288xf32>
    %c0_91 = arith.constant 0 : index
    %c0_92 = arith.constant 0 : index
    %c37_93 = arith.constant 37 : index
    %105 = vector.load %arg2[%c0_91, %c0_92, %c37_93] : memref<1x4x342xf32, #tpu.memory_space<vmem>>, vector<1x4x288xf32>
    %106 = vector.shape_cast %105 : vector<1x4x288xf32> to vector<4x288xf32>
    %c13 = arith.constant 13 : index
    %c0_94 = arith.constant 0 : index
    %c0_95 = arith.constant 0 : index
    %107 = vector.load %arg3[%c13, %c0_94, %c0_95] : memref<16x8x4xf32, #tpu.memory_space<vmem>>, vector<1x8x4xf32>
    %108 = vector.shape_cast %107 : vector<1x8x4xf32> to vector<8x4xf32>
    %cst_96 = arith.constant dense<0.000000e+00> : vector<8x288xf32>
    %109 = tpu.matmul %108, %106, %cst_96 {dimension_numbers = #tpu.dot_dimension_numbers<[1], [0], [0], [1], [0, 0, 1, 1], [], []>} : vector<8x4xf32>, vector<4x288xf32>, vector<8x288xf32> -> vector<8x288xf32>
    %110 = arith.addf %104, %109 : vector<8x288xf32>
    %c0_97 = arith.constant 0 : index
    %c0_98 = arith.constant 0 : index
    %c20_99 = arith.constant 20 : index
    %111 = vector.load %arg2[%c0_97, %c0_98, %c20_99] : memref<1x4x342xf32, #tpu.memory_space<vmem>>, vector<1x4x288xf32>
    %112 = vector.shape_cast %111 : vector<1x4x288xf32> to vector<4x288xf32>
    %c14 = arith.constant 14 : index
    %c0_100 = arith.constant 0 : index
    %c0_101 = arith.constant 0 : index
    %113 = vector.load %arg3[%c14, %c0_100, %c0_101] : memref<16x8x4xf32, #tpu.memory_space<vmem>>, vector<1x8x4xf32>
    %114 = vector.shape_cast %113 : vector<1x8x4xf32> to vector<8x4xf32>
    %cst_102 = arith.constant dense<0.000000e+00> : vector<8x288xf32>
    %115 = tpu.matmul %114, %112, %cst_102 {dimension_numbers = #tpu.dot_dimension_numbers<[1], [0], [0], [1], [0, 0, 1, 1], [], []>} : vector<8x4xf32>, vector<4x288xf32>, vector<8x288xf32> -> vector<8x288xf32>
    %116 = arith.addf %110, %115 : vector<8x288xf32>
    %c0_103 = arith.constant 0 : index
    %c0_104 = arith.constant 0 : index
    %c19_105 = arith.constant 19 : index
    %117 = vector.load %arg2[%c0_103, %c0_104, %c19_105] : memref<1x4x342xf32, #tpu.memory_space<vmem>>, vector<1x4x288xf32>
    %118 = vector.shape_cast %117 : vector<1x4x288xf32> to vector<4x288xf32>
    %c15 = arith.constant 15 : index
    %c0_106 = arith.constant 0 : index
    %c0_107 = arith.constant 0 : index
    %119 = vector.load %arg3[%c15, %c0_106, %c0_107] : memref<16x8x4xf32, #tpu.memory_space<vmem>>, vector<1x8x4xf32>
    %120 = vector.shape_cast %119 : vector<1x8x4xf32> to vector<8x4xf32>
    %cst_108 = arith.constant dense<0.000000e+00> : vector<8x288xf32>
    %121 = tpu.matmul %120, %118, %cst_108 {dimension_numbers = #tpu.dot_dimension_numbers<[1], [0], [0], [1], [0, 0, 1, 1], [], []>} : vector<8x4xf32>, vector<4x288xf32>, vector<8x288xf32> -> vector<8x288xf32>
    %122 = arith.addf %116, %121 : vector<8x288xf32>
    %123 = vector.broadcast %0 : vector<8x1xf32> to vector<8x288xf32>
    %124 = arith.addf %122, %123 : vector<8x288xf32>
    %cst_109 = arith.constant 0.000000e+00 : f32
    %125 = vector.broadcast %cst_109 : f32 to vector<8x288xf32>
    %126 = arith.cmpf oge, %124, %125 : vector<8x288xf32>
    %cst_110 = arith.constant 0.00999999977 : f32
    %127 = vector.broadcast %cst_110 : f32 to vector<8x288xf32>
    %128 = arith.mulf %127, %124 : vector<8x288xf32>
    %129 = arith.select %126, %124, %128 : vector<8x288xi1>, vector<8x288xf32>
    %c0_111 = arith.constant 0 : index
    %c3_112 = arith.constant 3 : index
    %c0_113 = arith.constant 0 : index
    %c0_114 = arith.constant 0 : index
    %130 = vector.load %arg5[%c0_111, %c3_112, %c0_113, %c0_114] : memref<1x4x8x288xf32, #tpu.memory_space<vmem>>, vector<1x1x8x288xf32>
    %131 = vector.shape_cast %130 : vector<1x1x8x288xf32> to vector<8x288xf32>
    %132 = vector.shape_cast %129 : vector<8x288xf32> to vector<1x1x8x288xf32>
    tpu.vector_store %arg5[%c0_111, %c3_112, %c0_113, %c0_114], %132 {strides = array<i32>} : memref<1x4x8x288xf32, #tpu.memory_space<vmem>>, vector<1x1x8x288xf32>,
    return
  }
  func.func @transform_0(%arg0: i32, %arg1: i32) -> (i32, i32, i32) {
    %c0_i32 = arith.constant 0 : i32
    %c0_i32_0 = arith.constant 0 : i32
    %c0_i32_1 = arith.constant 0 : i32
    return %arg0, %c0_i32, %c0_i32_0 : i32, i32, i32
  }
  func.func @transform_1(%arg0: i32, %arg1: i32) -> (i32, i32, i32) {
    %c0_i32 = arith.constant 0 : i32
    %c0_i32_0 = arith.constant 0 : i32
    %c0_i32_1 = arith.constant 0 : i32
    return %c0_i32, %arg1, %c0_i32_0 : i32, i32, i32
  }
  func.func @transform_2(%arg0: i32, %arg1: i32) -> (i32, i32) {
    %c0_i32 = arith.constant 0 : i32
    %c0_i32_0 = arith.constant 0 : i32
    return %arg1, %c0_i32 : i32, i32
  }
  func.func @transform_3(%arg0: i32, %arg1: i32) -> (i32, i32, i32, i32) {
    %c0_i32 = arith.constant 0 : i32
    %c0_i32_0 = arith.constant 0 : i32
    %c0_i32_1 = arith.constant 0 : i32
    return %arg0, %c0_i32, %arg1, %c0_i32_0 : i32, i32, i32, i32
  }
}

</mosaic_0001>

<llo_original>
// kernel: deconv_block_forward.1
$region0: #{deconv_block_forward.1}
  #allocation0 [shape = 'u32[]', space=smem, size = 0x4, offset = 0x4, fixed_abs, tag = 'smem constant byte address 0x4 - core index']
  #allocation1 [shape = 'u32[72,128]{1,0:T(1,128)}', space=vmem, size = 0x9000, scoped, tag = 'internal scratch']
  %s0 = inlined_call_operand.vmem [shape: f32[2,4,342], index: 0, kind: input, shape index: {}]
  %s1 = inlined_call_operand.vmem [shape: f32[16,8,4], index: 1, kind: input, shape index: {}]
  %s2 = inlined_call_operand.vmem [shape: f32[8,1], index: 2, kind: input, shape index: {}]
  %s3 = inlined_call_operand.vmem [shape: f32[2,4,8,288], index: 3, kind: output, shape index: {}]
  %s4 = sld [smem:[#allocation0]]
  $region45: #{deconv_block_forward.1} parent=0
    _
  %s6 = ssub.s32 1, %s4
  %s7 = scalar_select 0, %s6, %s4
  loop: start=0, step=1, limit=4
  $region2: #{deconv_block_forward.1} parent=0 // loop_pre_header
    _
  $region3: #{deconv_block_forward.1} parent=0 // loop_header
    %s9 = sphi 0, %s13
    %p10 = scmp.ge.s32.totalorder %s9, 4
    %s16 = sphi 0, %s28
    %s17 = sphi 0, %s24
    %s18 = sphi 0, %s16
    %s19 = sphi 0, %s17
    %s20 = sphi 0, %s18
    %s21 = sphi 0, %s19
    %s31 = sphi 0, %s33
    %s34 = sphi 0, %s31
    %s35 = sphi 0, %s34
    %s51 = sphi 0, %s35
    %s57 = sphi 0, %s59
    %s60 = sphi 0, %s57
    %s61 = sphi 0, %s60
    %s77 = sphi 0, %s61
    %s83 = sphi 0, %s85
    %s86 = sphi 0, %s83
    %s87 = sphi 0, %s86
    %s103 = sphi 0, %s87
    %s111 = sphi 0, %s113
    %s114 = sphi 0, %s111
    %s115 = sphi 0, %s114
    %s131 = sphi 0, %s115
  $region4: #{deconv_block_forward.1} parent=0 // loop_header_branch
    %12 = sbr.rel (%p10) target = $region8
  $region5: #{deconv_block_forward.1} parent=0 // loop_body
    %s14 = ssub.s32 %s9, 1
    %s15 = ssub.s32 %s9, 2
    %s22 = sadd.s32 1, %s17
    %p23 = scmp.ge.s32.totalorder %s22, 1
    %s24 = scalar_select %p23, 0, %s22
    %s25 = sadd.s32 1, %s16
    %s26 = scalar_select %p23, %s25, %s16
    %p27 = scmp.ge.s32.totalorder %s26, 2
    %s28 = scalar_select %p27, 0, %s26
    %s29 = ssub.s32 %s16, %s28
    %p30 = scmp.eq.s32.totalorder %s29, 0
    %s32 = sadd.s32 %s31, 1
    %s33 = scalar_select %p30, %s31, %s32
    %p36 = pneg %p30
    %p37 = scmp.eq.s32.totalorder %s9, 1
    %p38 = por %p36, %p37
    %p39 = scmp.ne.s32.totalorder %s31, %s34
    %p40 = scmp.eq.s32.totalorder %s9, 0
    %p41 = por %p39, %p40
    %p42 = scmp.ne.s32.totalorder %s31, %s34
    %p43 = scmp.eq.s32.totalorder %s14, 1
    %p44 = por %p42, %p43
    %p45 = scmp.ne.s32.totalorder %s34, %s35
    %p46 = scmp.eq.s32.totalorder %s14, 0
    %p47 = por %p45, %p46
    %p48 = scmp.ne.s32.totalorder %s34, %s35
    %p49 = scmp.eq.s32.totalorder %s15, 1
    %p50 = por %p48, %p49
    %p52 = scmp.ne.s32.totalorder %s35, %s51
    %p53 = scmp.eq.s32.totalorder %s15, 0
    %p54 = por %p52, %p53
    %s55 = ssub.s32 %s17, %s24
    %p56 = scmp.eq.s32.totalorder %s55, 0
    %s58 = sadd.s32 %s57, 1
    %s59 = scalar_select %p56, %s57, %s58
    %p62 = pneg %p56
    %p63 = scmp.eq.s32.totalorder %s9, 1
    %p64 = por %p62, %p63
    %p65 = scmp.ne.s32.totalorder %s57, %s60
    %p66 = scmp.eq.s32.totalorder %s9, 0
    %p67 = por %p65, %p66
    %p68 = scmp.ne.s32.totalorder %s57, %s60
    %p69 = scmp.eq.s32.totalorder %s14, 1
    %p70 = por %p68, %p69
    %p71 = scmp.ne.s32.totalorder %s60, %s61
    %p72 = scmp.eq.s32.totalorder %s14, 0
    %p73 = por %p71, %p72
    %p74 = scmp.ne.s32.totalorder %s60, %s61
    %p75 = scmp.eq.s32.totalorder %s15, 1
    %p76 = por %p74, %p75
    %p78 = scmp.ne.s32.totalorder %s61, %s77
    %p79 = scmp.eq.s32.totalorder %s15, 0
    %p80 = por %p78, %p79
    %s81 = ssub.s32 %s17, %s24
    %p82 = scmp.eq.s32.totalorder %s81, 0
    %s84 = sadd.s32 %s83, 1
    %s85 = scalar_select %p82, %s83, %s84
    %p88 = pneg %p82
    %p89 = scmp.eq.s32.totalorder %s9, 1
    %p90 = por %p88, %p89
    %p91 = scmp.ne.s32.totalorder %s83, %s86
    %p92 = scmp.eq.s32.totalorder %s9, 0
    %p93 = por %p91, %p92
    %p94 = scmp.ne.s32.totalorder %s83, %s86
    %p95 = scmp.eq.s32.totalorder %s14, 1
    %p96 = por %p94, %p95
    %p97 = scmp.ne.s32.totalorder %s86, %s87
    %p98 = scmp.eq.s32.totalorder %s14, 0
    %p99 = por %p97, %p98
    %p100 = scmp.ne.s32.totalorder %s86, %s87
    %p101 = scmp.eq.s32.totalorder %s15, 1
    %p102 = por %p100, %p101
    %p104 = scmp.ne.s32.totalorder %s87, %s103
    %p105 = scmp.eq.s32.totalorder %s15, 0
    %p106 = por %p104, %p105
    %s107 = ssub.s32 %s16, %s28
    %s108 = ssub.s32 %s17, %s24
    %s109 = sor.u32 %s107, %s108
    %p110 = scmp.eq.s32.totalorder %s109, 0
    %s112 = sadd.s32 %s111, 1
    %s113 = scalar_select %p110, %s111, %s112
    %p116 = pneg %p110
    %p117 = scmp.eq.s32.totalorder %s9, 1
    %p118 = por %p116, %p117
    %p119 = scmp.ne.s32.totalorder %s111, %s114
    %p120 = scmp.eq.s32.totalorder %s9, 0
    %p121 = por %p119, %p120
    %p122 = scmp.ne.s32.totalorder %s111, %s114
    %p123 = scmp.eq.s32.totalorder %s14, 1
    %p124 = por %p122, %p123
    %p125 = scmp.ne.s32.totalorder %s114, %s115
    %p126 = scmp.eq.s32.totalorder %s14, 0
    %p127 = por %p125, %p126
    %p128 = scmp.ne.s32.totalorder %s114, %s115
    %p129 = scmp.eq.s32.totalorder %s15, 1
    %p130 = por %p128, %p129
    %p132 = scmp.ne.s32.totalorder %s115, %s131
    %p133 = scmp.eq.s32.totalorder %s15, 0
    %p134 = por %p132, %p133
    %p135 = scmp.le.s32.totalorder 1, %s9
    %p136 = scmp.lt.s32.totalorder %s9, 3
    %p137 = pnand %p135, %p136
    %p138 = pneg %p137
    // Predicated region
    $region9: #{deconv_block_forward.1} parent=5 // pred_check
      _
    $region10: #{deconv_block_forward.1} parent=5 // pred_check_branch
      %140 = sbr.rel (%p137) target = $region12
    $region11: #{deconv_block_forward.1} parent=5 // pred_region
      %s141 = ssub.s32 %s9, 1
      // Predicated region
      $region13: #{deconv_block_forward.1} parent=11 // pred_check
        %p142 = pneg %p73
      $region14: #{deconv_block_forward.1} parent=11 // pred_check_branch
        %144 = sbr.rel (%p142) target = $region16
      $region15: #{deconv_block_forward.1} parent=11 // pred_region
        %p145 = scmp.lt.s32.totalorder %s19, 0
        %s146 = scalar_select %p145, %s19, 0
        %s147 = smul.addr %s146, 8
        %s148 = scalar_lea.vmem %s1, %s147
      $region16: #{deconv_block_forward.1} parent=11 // pred_fallthru
        _
      // Predicated region
      $region17: #{deconv_block_forward.1} parent=11 // pred_check
        %p149 = pneg %p99
      $region18: #{deconv_block_forward.1} parent=11 // pred_check_branch
        %151 = sbr.rel (%p149) target = $region20
      $region19: #{deconv_block_forward.1} parent=11 // pred_region
        %p152 = scmp.lt.s32.totalorder %s19, 0
        %s153 = scalar_select %p152, %s19, 0
        %s154 = smul.addr %s153, 8
        %s155 = scalar_lea.vmem %s2, %s154
      $region20: #{deconv_block_forward.1} parent=11 // pred_fallthru
        _
    $region12: #{deconv_block_forward.1} parent=5 // pred_fallthru
      _
    %p156 = scmp.lt.s32.totalorder %s9, 2
    // Predicated region
    $region21: #{deconv_block_forward.1} parent=5 // pred_check
      %p157 = pneg %p156
    $region22: #{deconv_block_forward.1} parent=5 // pred_check_branch
      %159 = sbr.rel (%p157) target = $region24
    $region23: #{deconv_block_forward.1} parent=5 // pred_region
      // Predicated region
      $region25: #{deconv_block_forward.1} parent=23 // pred_check
        %p160 = pneg %p41
      $region26: #{deconv_block_forward.1} parent=23 // pred_check_branch
        %162 = sbr.rel (%p160) target = $region28
      $region27: #{deconv_block_forward.1} parent=23 // pred_region
        %p163 = scmp.lt.s32.totalorder %s16, 1
        %s164 = scalar_select %p163, %s16, 1
        %s165 = smul.addr %s164, 3
        %s166 = smul.addr %s165, 4
        %s167 = scalar_lea.vmem %s0, %s166
      $region28: #{deconv_block_forward.1} parent=23 // pred_fallthru
        _
    $region24: #{deconv_block_forward.1} parent=5 // pred_fallthru
      _
    %p168 = scmp.le.s32.totalorder 1, %s9
    %p169 = scmp.lt.s32.totalorder %s9, 3
    %p170 = pnand %p168, %p169
    %p171 = pneg %p170
    // Predicated region
    $region29: #{deconv_block_forward.1} parent=5 // pred_check
      _
    $region30: #{deconv_block_forward.1} parent=5 // pred_check_branch
      %173 = sbr.rel (%p170) target = $region32
    $region31: #{deconv_block_forward.1} parent=5 // pred_region
      %s174 = ssub.s32 %s9, 1
      %p175 = scmp.lt.s32.totalorder %s18, 1
      %s176 = scalar_select %p175, %s18, 1
      %s177 = smul.addr %s176, 3
      %s178 = smul.addr %s177, 4
      %s179 = scalar_lea.vmem %s0, %s178
      %p180 = pneg %p47
      %p181 = pneg %p44
      %p182 = scmp.lt.s32.totalorder %s19, 0
      %s183 = scalar_select %p182, %s19, 0
      %s184 = smul.addr %s183, 8
      %s185 = scalar_lea.vmem %s1, %s184
      %p186 = pneg %p73
      %p187 = pneg %p70
      %p188 = scmp.lt.s32.totalorder %s19, 0
      %s189 = scalar_select %p188, %s19, 0
      %s190 = smul.addr %s189, 8
      %s191 = scalar_lea.vmem %s2, %s190
      %p192 = pneg %p99
      %p193 = pneg %p96
      %p194 = pneg %p127
      %p195 = pneg %p124
      %p196 = scmp.lt.s32.totalorder %s18, 1
      %s197 = scalar_select %p196, %s18, 1
      %p198 = scmp.lt.s32.totalorder %s19, 0
      %s199 = scalar_select %p198, %s19, 0
      %s200 = smul.addr %s199, 3
      %s201 = smul.addr %s197, 12
      %s202 = sadd.s32 %s200, %s201
      %s203 = smul.addr %s202, 8
      %s204 = scalar_lea.vmem %s3, %s203
      %p205 = scmp.lt.s32.totalorder %s18, 1
      %s206 = scalar_select %p205, %s18, 1
      %s207 = smul.addr %s206, 3
      %s208 = smul.addr %s207, 4
      %s209 = scalar_lea.vmem %s0, %s208
      %p210 = scmp.lt.s32.totalorder %s19, 0
      %s211 = scalar_select %p210, %s19, 0
      %s212 = smul.addr %s211, 8
      %s213 = scalar_lea.vmem %s1, %s212
      %p214 = scmp.lt.s32.totalorder %s19, 0
      %s215 = scalar_select %p214, %s19, 0
      %s216 = smul.addr %s215, 8
      %s217 = scalar_lea.vmem %s2, %s216
      %p218 = scmp.lt.s32.totalorder %s18, 1
      %s219 = scalar_select %p218, %s18, 1
      %p220 = scmp.lt.s32.totalorder %s19, 0
      %s221 = scalar_select %p220, %s19, 0
      %s222 = smul.addr %s221, 3
      %s223 = smul.addr %s219, 12
      %s224 = sadd.s32 %s222, %s223
      %s225 = smul.addr %s224, 8
      %s226 = scalar_lea.vmem %s3, %s225
      %v227 = vld [vmem:[%s217] sm:$0xff]
      %v228 = vld [vmem:[%s209] sm:$0xff]
      %v229 = vld [vmem:[%s209 + $0x8] sm:$0xf]
      %v230 = vld [vmem:[%s213] sm:$0xff]
      %s231 = scalar_lea.vmem %s213, 8
      %v232 = vld [vmem:[%s231] sm:$0xff]
      %235 = vst [vmem:[#allocation1] ss:$2 sm:$0xff] %v228
      %s236 = scalar_lea.vmem [#allocation1], 16
      %237 = vst [vmem:[%s236] ss:$2 sm:$0xff] %v229
      %v238 = vld.sshfl [vmem:[#allocation1] sm:$0xff pattern:$0x75316420]
      %v239 = vld.sshfl [vmem:[#allocation1 + $0x8] sm:$0xff pattern:$0x75316420]
      %v240 = vld.sshfl [vmem:[#allocation1 + $0x10] sm:$0xff pattern:$0x75316420]
      %241 = vrot.lane.b32.xlu0 %v238, 110
      %v242 = vpop.permute.xlu0 %241
      %243 = vrot.lane.b32.xlu0 %v239, 110
      %v244 = vpop.permute.xlu0 %243
      %245 = vrot.lane.b32.xlu0 %v240, 110
      %v246 = vpop.permute.xlu0 %245
      %vm247 = vcmask 900096
      %v248 = vsel %vm247, %v242, %v244
      %v249 = vsel %vm247, %v244, %v246
      %vm250 = vcmask 31744
      %v252 = vsel %vm250, %v232, 0
      %vm254 = vcmask 1043456
      %v255 = vsel %vm254, %v248, 0
      %v257 = vsel %vm254, %v249, 0
      %v259 = vsel %vm254, %v246, 0
      %261 = vmatpush.msra.mxu0 0.0
      %262 = vmatpush.msra.mxu0 0.0
      %263 = vmatpush.msra.mxu0 0.0
      %264 = vmatpush.msra.mxu0 0.0
      %265 = vmatpush.msra.mxu0 0.0
      %266 = vmatpush.msra.mxu0 0.0
      %267 = vmatpush.msra.mxu0 0.0
      %268 = vmatpush.msra.mxu0 0.0
      %269 = vmatpush.msra.mxu0 0.0
      %270 = vmatpush.msra.mxu0 0.0
      %271 = vmatpush.msra.mxu0 0.0
      %272 = vmatpush.msra.mxu0 0.0
      %273 = vmatpush.msra.mxu0 0.0
      %274 = vmatpush.msra.mxu0 0.0
      %275 = vmatpush.msra.mxu0 0.0
      %276 = vmatpush.msra.mxu0 %v255
      %277 = vmatmul.f32.gmra.mxu0 %v252
      %v278 = vpop.f32.mrf.mxu0
      %v279 = vadd.f32 0.0, %v278
      %280 = vdwg.mxu0
      %281 = vmatpush.msra.mxu0 0.0
      %282 = vmatpush.msra.mxu0 0.0
      %283 = vmatpush.msra.mxu0 0.0
      %284 = vmatpush.msra.mxu0 0.0
      %285 = vmatpush.msra.mxu0 0.0
      %286 = vmatpush.msra.mxu0 0.0
      %287 = vmatpush.msra.mxu0 0.0
      %288 = vmatpush.msra.mxu0 0.0
      %289 = vmatpush.msra.mxu0 0.0
      %290 = vmatpush.msra.mxu0 0.0
      %291 = vmatpush.msra.mxu0 0.0
      %292 = vmatpush.msra.mxu0 0.0
      %293 = vmatpush.msra.mxu0 0.0
      %294 = vmatpush.msra.mxu0 0.0
      %295 = vmatpush.msra.mxu0 0.0
      %296 = vmatpush.msra.mxu0 %v257
      %297 = vmatmul.f32.gmra.mxu0 %v252
      %v298 = vpop.f32.mrf.mxu0
      %v299 = vadd.f32 0.0, %v298
      %300 = vdwg.mxu0
      %301 = vmatpush.msra.mxu0 0.0
      %302 = vmatpush.msra.mxu0 0.0
      %303 = vmatpush.msra.mxu0 0.0
      %304 = vmatpush.msra.mxu0 0.0
      %305 = vmatpush.msra.mxu0 0.0
      %306 = vmatpush.msra.mxu0 0.0
      %307 = vmatpush.msra.mxu0 0.0
      %308 = vmatpush.msra.mxu0 0.0
      %309 = vmatpush.msra.mxu0 0.0
      %310 = vmatpush.msra.mxu0 0.0
      %311 = vmatpush.msra.mxu0 0.0
      %312 = vmatpush.msra.mxu0 0.0
      %313 = vmatpush.msra.mxu0 0.0
      %314 = vmatpush.msra.mxu0 0.0
      %315 = vmatpush.msra.mxu0 0.0
      %316 = vmatpush.msra.mxu0 %v259
      %317 = vmatmul.f32.gmra.mxu0 %v252
      %v318 = vpop.f32.mrf.mxu0
      %v319 = vadd.f32 0.0, %v318
      %320 = vdwg.mxu0
      %321 = vst [vmem:[#allocation1] ss:$2 sm:$0xff] %v228
      %s322 = scalar_lea.vmem [#allocation1], 16
      %323 = vst [vmem:[%s322] ss:$2 sm:$0xff] %v229
      %v324 = vld.sshfl [vmem:[#allocation1] sm:$0xff pattern:$0x75316420]
      %v325 = vld.sshfl [vmem:[#allocation1 + $0x8] sm:$0xff pattern:$0x75316420]
      %v326 = vld.sshfl [vmem:[#allocation1 + $0x10] sm:$0xff pattern:$0x75316420]
      %327 = vrot.lane.b32.xlu0 %v324, 109
      %v328 = vpop.permute.xlu0 %327
      %329 = vrot.lane.b32.xlu0 %v325, 109
      %v330 = vpop.permute.xlu0 %329
      %331 = vrot.lane.b32.xlu0 %v326, 109
      %v332 = vpop.permute.xlu0 %331
      %vm333 = vcmask 891904
      %v334 = vsel %vm333, %v328, %v330
      %v335 = vsel %vm333, %v330, %v332
      %v337 = vsel %vm250, %v230, 0
      %v339 = vsel %vm254, %v334, 0
      %v341 = vsel %vm254, %v335, 0
      %v343 = vsel %vm254, %v332, 0
      %345 = vmatpush.msra.mxu0 0.0
      %346 = vmatpush.msra.mxu0 0.0
      %347 = vmatpush.msra.mxu0 0.0
      %348 = vmatpush.msra.mxu0 0.0
      %349 = vmatpush.msra.mxu0 0.0
      %350 = vmatpush.msra.mxu0 0.0
      %351 = vmatpush.msra.mxu0 0.0
      %352 = vmatpush.msra.mxu0 0.0
      %353 = vmatpush.msra.mxu0 0.0
      %354 = vmatpush.msra.mxu0 0.0
      %355 = vmatpush.msra.mxu0 0.0
      %356 = vmatpush.msra.mxu0 0.0
      %357 = vmatpush.msra.mxu0 0.0
      %358 = vmatpush.msra.mxu0 0.0
      %359 = vmatpush.msra.mxu0 0.0
      %360 = vmatpush.msra.mxu0 %v339
      %361 = vmatmul.f32.gmra.mxu0 %v337
      %v362 = vpop.f32.mrf.mxu0
      %v363 = vadd.f32 %v279, %v362
      %364 = vdwg.mxu0
      %365 = vmatpush.msra.mxu0 0.0
      %366 = vmatpush.msra.mxu0 0.0
      %367 = vmatpush.msra.mxu0 0.0
      %368 = vmatpush.msra.mxu0 0.0
      %369 = vmatpush.msra.mxu0 0.0
      %370 = vmatpush.msra.mxu0 0.0
      %371 = vmatpush.msra.mxu0 0.0
      %372 = vmatpush.msra.mxu0 0.0
      %373 = vmatpush.msra.mxu0 0.0
      %374 = vmatpush.msra.mxu0 0.0
      %375 = vmatpush.msra.mxu0 0.0
      %376 = vmatpush.msra.mxu0 0.0
      %377 = vmatpush.msra.mxu0 0.0
      %378 = vmatpush.msra.mxu0 0.0
      %379 = vmatpush.msra.mxu0 0.0
      %380 = vmatpush.msra.mxu0 %v341
      %381 = vmatmul.f32.gmra.mxu0 %v337
      %v382 = vpop.f32.mrf.mxu0
      %v383 = vadd.f32 %v299, %v382
      %384 = vdwg.mxu0
      %385 = vmatpush.msra.mxu0 0.0
      %386 = vmatpush.msra.mxu0 0.0
      %387 = vmatpush.msra.mxu0 0.0
      %388 = vmatpush.msra.mxu0 0.0
      %389 = vmatpush.msra.mxu0 0.0
      %390 = vmatpush.msra.mxu0 0.0
      %391 = vmatpush.msra.mxu0 0.0
      %392 = vmatpush.msra.mxu0 0.0
      %393 = vmatpush.msra.mxu0 0.0
      %394 = vmatpush.msra.mxu0 0.0
      %395 = vmatpush.msra.mxu0 0.0
      %396 = vmatpush.msra.mxu0 0.0
      %397 = vmatpush.msra.mxu0 0.0
      %398 = vmatpush.msra.mxu0 0.0
      %399 = vmatpush.msra.mxu0 0.0
      %400 = vmatpush.msra.mxu0 %v343
      %401 = vmatmul.f32.gmra.mxu0 %v337
      %v402 = vpop.f32.mrf.mxu0
      %v403 = vadd.f32 %v319, %v402
      %404 = vdwg.mxu0
      %v405 = vld [vmem:[%s209] sm:$0xff]
      %v406 = vld [vmem:[%s209 + $0x8] sm:$0xf]
      %s407 = scalar_lea.vmem %s213, 16
      %v408 = vld [vmem:[%s407] sm:$0xff]
      %411 = vst [vmem:[#allocation1] ss:$2 sm:$0xff] %v405
      %s412 = scalar_lea.vmem [#allocation1], 16
      %413 = vst [vmem:[%s412] ss:$2 sm:$0xff] %v406
      %v414 = vld.sshfl [vmem:[#allocation1] sm:$0xff pattern:$0x75316420]
      %v415 = vld.sshfl [vmem:[#allocation1 + $0x8] sm:$0xff pattern:$0x75316420]
      %v416 = vld.sshfl [vmem:[#allocation1 + $0x10] sm:$0xff pattern:$0x75316420]
      %417 = vrot.lane.b32.xlu0 %v414, 127
      %v418 = vpop.permute.xlu0 %417
      %419 = vrot.lane.b32.xlu0 %v415, 127
      %v420 = vpop.permute.xlu0 %419
      %421 = vrot.lane.b32.xlu0 %v416, 127
      %v422 = vpop.permute.xlu0 %421
      %vm423 = vcmask 1039360
      %v424 = vsel %vm423, %v418, %v420
      %v425 = vsel %vm423, %v420, %v422
      %v427 = vsel %vm250, %v408, 0
      %v429 = vsel %vm254, %v424, 0
      %v431 = vsel %vm254, %v425, 0
      %v433 = vsel %vm254, %v422, 0
      %435 = vmatpush.msra.mxu0 0.0
      %436 = vmatpush.msra.mxu0 0.0
      %437 = vmatpush.msra.mxu0 0.0
      %438 = vmatpush.msra.mxu0 0.0
      %439 = vmatpush.msra.mxu0 0.0
      %440 = vmatpush.msra.mxu0 0.0
      %441 = vmatpush.msra.mxu0 0.0
      %442 = vmatpush.msra.mxu0 0.0
      %443 = vmatpush.msra.mxu0 0.0
      %444 = vmatpush.msra.mxu0 0.0
      %445 = vmatpush.msra.mxu0 0.0
      %446 = vmatpush.msra.mxu0 0.0
      %447 = vmatpush.msra.mxu0 0.0
      %448 = vmatpush.msra.mxu0 0.0
      %449 = vmatpush.msra.mxu0 0.0
      %450 = vmatpush.msra.mxu0 %v429
      %451 = vmatmul.f32.gmra.mxu0 %v427
      %v452 = vpop.f32.mrf.mxu0
      %v453 = vadd.f32 0.0, %v452
      %454 = vdwg.mxu0
      %455 = vmatpush.msra.mxu0 0.0
      %456 = vmatpush.msra.mxu0 0.0
      %457 = vmatpush.msra.mxu0 0.0
      %458 = vmatpush.msra.mxu0 0.0
      %459 = vmatpush.msra.mxu0 0.0
      %460 = vmatpush.msra.mxu0 0.0
      %461 = vmatpush.msra.mxu0 0.0
      %462 = vmatpush.msra.mxu0 0.0
      %463 = vmatpush.msra.mxu0 0.0
      %464 = vmatpush.msra.mxu0 0.0
      %465 = vmatpush.msra.mxu0 0.0
      %466 = vmatpush.msra.mxu0 0.0
      %467 = vmatpush.msra.mxu0 0.0
      %468 = vmatpush.msra.mxu0 0.0
      %469 = vmatpush.msra.mxu0 0.0
      %470 = vmatpush.msra.mxu0 %v431
      %471 = vmatmul.f32.gmra.mxu0 %v427
      %v472 = vpop.f32.mrf.mxu0
      %v473 = vadd.f32 0.0, %v472
      %474 = vdwg.mxu0
      %475 = vmatpush.msra.mxu0 0.0
      %476 = vmatpush.msra.mxu0 0.0
      %477 = vmatpush.msra.mxu0 0.0
      %478 = vmatpush.msra.mxu0 0.0
      %479 = vmatpush.msra.mxu0 0.0
      %480 = vmatpush.msra.mxu0 0.0
      %481 = vmatpush.msra.mxu0 0.0
      %482 = vmatpush.msra.mxu0 0.0
      %483 = vmatpush.msra.mxu0 0.0
      %484 = vmatpush.msra.mxu0 0.0
      %485 = vmatpush.msra.mxu0 0.0
      %486 = vmatpush.msra.mxu0 0.0
      %487 = vmatpush.msra.mxu0 0.0
      %488 = vmatpush.msra.mxu0 0.0
      %489 = vmatpush.msra.mxu0 0.0
      %490 = vmatpush.msra.mxu0 %v433
      %491 = vmatmul.f32.gmra.mxu0 %v427
      %v492 = vpop.f32.mrf.mxu0
      %v493 = vadd.f32 0.0, %v492
      %494 = vdwg.mxu0
      %v495 = vadd.f32 %v363, %v453
      %v496 = vadd.f32 %v383, %v473
      %v497 = vadd.f32 %v403, %v493
      %v498 = vld [vmem:[%s209] sm:$0xff]
      %v499 = vld [vmem:[%s209 + $0x8] sm:$0xf]
      %s500 = scalar_lea.vmem %s213, 24
      %v501 = vld [vmem:[%s500] sm:$0xff]
      %504 = vst [vmem:[#allocation1] ss:$2 sm:$0xff] %v498
      %s505 = scalar_lea.vmem [#allocation1], 16
      %506 = vst [vmem:[%s505] ss:$2 sm:$0xff] %v499
      %v507 = vld.sshfl [vmem:[#allocation1] sm:$0xff pattern:$0x75316420]
      %v508 = vld.sshfl [vmem:[#allocation1 + $0x8] sm:$0xff pattern:$0x75316420]
      %v509 = vld.sshfl [vmem:[#allocation1 + $0x10] sm:$0xff pattern:$0x75316420]
      %v511 = vsel %vm250, %v501, 0
      %v513 = vsel %vm254, %v507, 0
      %v515 = vsel %vm254, %v508, 0
      %v517 = vsel %vm254, %v509, 0
      %519 = vmatpush.msra.mxu0 0.0
      %520 = vmatpush.msra.mxu0 0.0
      %521 = vmatpush.msra.mxu0 0.0
      %522 = vmatpush.msra.mxu0 0.0
      %523 = vmatpush.msra.mxu0 0.0
      %524 = vmatpush.msra.mxu0 0.0
      %525 = vmatpush.msra.mxu0 0.0
      %526 = vmatpush.msra.mxu0 0.0
      %527 = vmatpush.msra.mxu0 0.0
      %528 = vmatpush.msra.mxu0 0.0
      %529 = vmatpush.msra.mxu0 0.0
      %530 = vmatpush.msra.mxu0 0.0
      %531 = vmatpush.msra.mxu0 0.0
      %532 = vmatpush.msra.mxu0 0.0
      %533 = vmatpush.msra.mxu0 0.0
      %534 = vmatpush.msra.mxu0 %v513
      %535 = vmatmul.f32.gmra.mxu0 %v511
      %v536 = vpop.f32.mrf.mxu0
      %v537 = vadd.f32 0.0, %v536
      %538 = vdwg.mxu0
      %539 = vmatpush.msra.mxu0 0.0
      %540 = vmatpush.msra.mxu0 0.0
      %541 = vmatpush.msra.mxu0 0.0
      %542 = vmatpush.msra.mxu0 0.0
      %543 = vmatpush.msra.mxu0 0.0
      %544 = vmatpush.msra.mxu0 0.0
      %545 = vmatpush.msra.mxu0 0.0
      %546 = vmatpush.msra.mxu0 0.0
      %547 = vmatpush.msra.mxu0 0.0
      %548 = vmatpush.msra.mxu0 0.0
      %549 = vmatpush.msra.mxu0 0.0
      %550 = vmatpush.msra.mxu0 0.0
      %551 = vmatpush.msra.mxu0 0.0
      %552 = vmatpush.msra.mxu0 0.0
      %553 = vmatpush.msra.mxu0 0.0
      %554 = vmatpush.msra.mxu0 %v515
      %555 = vmatmul.f32.gmra.mxu0 %v511
      %v556 = vpop.f32.mrf.mxu0
      %v557 = vadd.f32 0.0, %v556
      %558 = vdwg.mxu0
      %559 = vmatpush.msra.mxu0 0.0
      %560 = vmatpush.msra.mxu0 0.0
      %561 = vmatpush.msra.mxu0 0.0
      %562 = vmatpush.msra.mxu0 0.0
      %563 = vmatpush.msra.mxu0 0.0
      %564 = vmatpush.msra.mxu0 0.0
      %565 = vmatpush.msra.mxu0 0.0
      %566 = vmatpush.msra.mxu0 0.0
      %567 = vmatpush.msra.mxu0 0.0
      %568 = vmatpush.msra.mxu0 0.0
      %569 = vmatpush.msra.mxu0 0.0
      %570 = vmatpush.msra.mxu0 0.0
      %571 = vmatpush.msra.mxu0 0.0
      %572 = vmatpush.msra.mxu0 0.0
      %573 = vmatpush.msra.mxu0 0.0
      %574 = vmatpush.msra.mxu0 %v517
      %575 = vmatmul.f32.gmra.mxu0 %v511
      %v576 = vpop.f32.mrf.mxu0
      %v577 = vadd.f32 0.0, %v576
      %578 = vdwg.mxu0
      %v579 = vadd.f32 %v495, %v537
      %v580 = vadd.f32 %v496, %v557
      %v581 = vadd.f32 %v497, %v577
      %583 = vset.pattern.permute.xlu0 0
      %584 = vperm.xlu0 %583, %v227
      %v585 = vpop.permute.xlu0 %584
      %v587 = vadd.f32 %v579, %v585
      %v588 = vadd.f32 %v580, %v585
      %v589 = vadd.f32 %v581, %v585
      %vm590 = vcmp.ge.f32.partialorder %v587, 0.0
      %vm591 = vcmp.ge.f32.partialorder %v588, 0.0
      %vm592 = vcmp.ge.f32.partialorder %v589, 0.0
      %v593 = vmul.f32 %v587, 0.01
      %v594 = vmul.f32 %v588, 0.01
      %v595 = vmul.f32 %v589, 0.01
      %v596 = vsel %vm590, %v587, %v593
      %v597 = vsel %vm591, %v588, %v594
      %v598 = vsel %vm592, %v589, %v595
      %599 = vst [vmem:[%s226] sm:$0xff] %v596
      %600 = vst [vmem:[%s226 + $0x8] sm:$0xff] %v597
      %vm601 = vcmask 261120
      %602 = vst.msk [vmem:[%s226 + $0x10] sm:$0xff] %vm601, %v598
      %v603 = vld [vmem:[%s209] sm:$0xff]
      %v604 = vld [vmem:[%s209 + $0x8] sm:$0xf]
      %s605 = scalar_lea.vmem %s213, 32
      %v606 = vld [vmem:[%s605] sm:$0xff]
      %s607 = scalar_lea.vmem %s213, 40
      %v608 = vld [vmem:[%s607] sm:$0xff]
      %611 = vst [vmem:[#allocation1] ss:$2 sm:$0xff] %v603
      %s612 = scalar_lea.vmem [#allocation1], 16
      %613 = vst [vmem:[%s612] ss:$2 sm:$0xff] %v604
      %v614 = vld.sshfl [vmem:[#allocation1] sm:$0xff pattern:$0x75316420]
      %v615 = vld.sshfl [vmem:[#allocation1 + $0x8] sm:$0xff pattern:$0x75316420]
      %v616 = vld.sshfl [vmem:[#allocation1 + $0x10] sm:$0xff pattern:$0x75316420]
      %617 = vrot.lane.b32.xlu0 %v614, 109
      %v618 = vpop.permute.xlu0 %617
      %619 = vrot.lane.b32.xlu0 %v615, 109
      %v620 = vpop.permute.xlu0 %619
      %621 = vrot.lane.b32.xlu0 %v616, 109
      %v622 = vpop.permute.xlu0 %621
      %v623 = vsel %vm333, %v618, %v620
      %v624 = vsel %vm333, %v620, %v622
      %v626 = vsel %vm250, %v608, 0
      %v628 = vsel %vm254, %v623, 0
      %v630 = vsel %vm254, %v624, 0
      %v632 = vsel %vm254, %v622, 0
      %634 = vmatpush.msra.mxu0 0.0
      %635 = vmatpush.msra.mxu0 0.0
      %636 = vmatpush.msra.mxu0 0.0
      %637 = vmatpush.msra.mxu0 0.0
      %638 = vmatpush.msra.mxu0 0.0
      %639 = vmatpush.msra.mxu0 0.0
      %640 = vmatpush.msra.mxu0 0.0
      %641 = vmatpush.msra.mxu0 0.0
      %642 = vmatpush.msra.mxu0 0.0
      %643 = vmatpush.msra.mxu0 0.0
      %644 = vmatpush.msra.mxu0 0.0
      %645 = vmatpush.msra.mxu0 0.0
      %646 = vmatpush.msra.mxu0 0.0
      %647 = vmatpush.msra.mxu0 0.0
      %648 = vmatpush.msra.mxu0 0.0
      %649 = vmatpush.msra.mxu0 %v628
      %650 = vmatmul.f32.gmra.mxu0 %v626
      %v651 = vpop.f32.mrf.mxu0
      %v652 = vadd.f32 0.0, %v651
      %653 = vdwg.mxu0
      %654 = vmatpush.msra.mxu0 0.0
      %655 = vmatpush.msra.mxu0 0.0
      %656 = vmatpush.msra.mxu0 0.0
      %657 = vmatpush.msra.mxu0 0.0
      %658 = vmatpush.msra.mxu0 0.0
      %659 = vmatpush.msra.mxu0 0.0
      %660 = vmatpush.msra.mxu0 0.0
      %661 = vmatpush.msra.mxu0 0.0
      %662 = vmatpush.msra.mxu0 0.0
      %663 = vmatpush.msra.mxu0 0.0
      %664 = vmatpush.msra.mxu0 0.0
      %665 = vmatpush.msra.mxu0 0.0
      %666 = vmatpush.msra.mxu0 0.0
      %667 = vmatpush.msra.mxu0 0.0
      %668 = vmatpush.msra.mxu0 0.0
      %669 = vmatpush.msra.mxu0 %v630
      %670 = vmatmul.f32.gmra.mxu0 %v626
      %v671 = vpop.f32.mrf.mxu0
      %v672 = vadd.f32 0.0, %v671
      %673 = vdwg.mxu0
      %674 = vmatpush.msra.mxu0 0.0
      %675 = vmatpush.msra.mxu0 0.0
      %676 = vmatpush.msra.mxu0 0.0
      %677 = vmatpush.msra.mxu0 0.0
      %678 = vmatpush.msra.mxu0 0.0
      %679 = vmatpush.msra.mxu0 0.0
      %680 = vmatpush.msra.mxu0 0.0
      %681 = vmatpush.msra.mxu0 0.0
      %682 = vmatpush.msra.mxu0 0.0
      %683 = vmatpush.msra.mxu0 0.0
      %684 = vmatpush.msra.mxu0 0.0
      %685 = vmatpush.msra.mxu0 0.0
      %686 = vmatpush.msra.mxu0 0.0
      %687 = vmatpush.msra.mxu0 0.0
      %688 = vmatpush.msra.mxu0 0.0
      %689 = vmatpush.msra.mxu0 %v632
      %690 = vmatmul.f32.gmra.mxu0 %v626
      %v691 = vpop.f32.mrf.mxu0
      %v692 = vadd.f32 0.0, %v691
      %693 = vdwg.mxu0
      %694 = vst [vmem:[#allocation1] ss:$2 sm:$0xff] %v603
      %s695 = scalar_lea.vmem [#allocation1], 16
      %696 = vst [vmem:[%s695] ss:$2 sm:$0xff] %v604
      %v697 = vld.sshfl [vmem:[#allocation1] sm:$0xff pattern:$0x75316420]
      %v698 = vld.sshfl [vmem:[#allocation1 + $0x8] sm:$0xff pattern:$0x75316420]
      %v699 = vld.sshfl [vmem:[#allocation1 + $0x10] sm:$0xff pattern:$0x75316420]
      %700 = vrot.lane.b32.xlu0 %v697, 108
      %v701 = vpop.permute.xlu0 %700
      %702 = vrot.lane.b32.xlu0 %v698, 108
      %v703 = vpop.permute.xlu0 %702
      %704 = vrot.lane.b32.xlu0 %v699, 108
      %v705 = vpop.permute.xlu0 %704
      %vm706 = vcmask 883712
      %v707 = vsel %vm706, %v701, %v703
      %v708 = vsel %vm706, %v703, %v705
      %v710 = vsel %vm250, %v606, 0
      %v712 = vsel %vm254, %v707, 0
      %v714 = vsel %vm254, %v708, 0
      %v716 = vsel %vm254, %v705, 0
      %718 = vmatpush.msra.mxu0 0.0
      %719 = vmatpush.msra.mxu0 0.0
      %720 = vmatpush.msra.mxu0 0.0
      %721 = vmatpush.msra.mxu0 0.0
      %722 = vmatpush.msra.mxu0 0.0
      %723 = vmatpush.msra.mxu0 0.0
      %724 = vmatpush.msra.mxu0 0.0
      %725 = vmatpush.msra.mxu0 0.0
      %726 = vmatpush.msra.mxu0 0.0
      %727 = vmatpush.msra.mxu0 0.0
      %728 = vmatpush.msra.mxu0 0.0
      %729 = vmatpush.msra.mxu0 0.0
      %730 = vmatpush.msra.mxu0 0.0
      %731 = vmatpush.msra.mxu0 0.0
      %732 = vmatpush.msra.mxu0 0.0
      %733 = vmatpush.msra.mxu0 %v712
      %734 = vmatmul.f32.gmra.mxu0 %v710
      %v735 = vpop.f32.mrf.mxu0
      %v736 = vadd.f32 %v652, %v735
      %737 = vdwg.mxu0
      %738 = vmatpush.msra.mxu0 0.0
      %739 = vmatpush.msra.mxu0 0.0
      %740 = vmatpush.msra.mxu0 0.0
      %741 = vmatpush.msra.mxu0 0.0
      %742 = vmatpush.msra.mxu0 0.0
      %743 = vmatpush.msra.mxu0 0.0
      %744 = vmatpush.msra.mxu0 0.0
      %745 = vmatpush.msra.mxu0 0.0
      %746 = vmatpush.msra.mxu0 0.0
      %747 = vmatpush.msra.mxu0 0.0
      %748 = vmatpush.msra.mxu0 0.0
      %749 = vmatpush.msra.mxu0 0.0
      %750 = vmatpush.msra.mxu0 0.0
      %751 = vmatpush.msra.mxu0 0.0
      %752 = vmatpush.msra.mxu0 0.0
      %753 = vmatpush.msra.mxu0 %v714
      %754 = vmatmul.f32.gmra.mxu0 %v710
      %v755 = vpop.f32.mrf.mxu0
      %v756 = vadd.f32 %v672, %v755
      %757 = vdwg.mxu0
      %758 = vmatpush.msra.mxu0 0.0
      %759 = vmatpush.msra.mxu0 0.0
      %760 = vmatpush.msra.mxu0 0.0
      %761 = vmatpush.msra.mxu0 0.0
      %762 = vmatpush.msra.mxu0 0.0
      %763 = vmatpush.msra.mxu0 0.0
      %764 = vmatpush.msra.mxu0 0.0
      %765 = vmatpush.msra.mxu0 0.0
      %766 = vmatpush.msra.mxu0 0.0
      %767 = vmatpush.msra.mxu0 0.0
      %768 = vmatpush.msra.mxu0 0.0
      %769 = vmatpush.msra.mxu0 0.0
      %770 = vmatpush.msra.mxu0 0.0
      %771 = vmatpush.msra.mxu0 0.0
      %772 = vmatpush.msra.mxu0 0.0
      %773 = vmatpush.msra.mxu0 %v716
      %774 = vmatmul.f32.gmra.mxu0 %v710
      %v775 = vpop.f32.mrf.mxu0
      %v776 = vadd.f32 %v692, %v775
      %777 = vdwg.mxu0
      %v778 = vld [vmem:[%s209] sm:$0xff]
      %v779 = vld [vmem:[%s209 + $0x8] sm:$0xf]
      %s780 = scalar_lea.vmem %s213, 48
      %v781 = vld [vmem:[%s780] sm:$0xff]
      %784 = vst [vmem:[#allocation1] ss:$2 sm:$0xff] %v778
      %s785 = scalar_lea.vmem [#allocation1], 16
      %786 = vst [vmem:[%s785] ss:$2 sm:$0xff] %v779
      %v787 = vld.sshfl [vmem:[#allocation1] sm:$0xff pattern:$0x75316420]
      %v788 = vld.sshfl [vmem:[#allocation1 + $0x8] sm:$0xff pattern:$0x75316420]
      %v789 = vld.sshfl [vmem:[#allocation1 + $0x10] sm:$0xff pattern:$0x75316420]
      %790 = vrot.lane.b32.xlu0 %v787, 126
      %v791 = vpop.permute.xlu0 %790
      %792 = vrot.lane.b32.xlu0 %v788, 126
      %v793 = vpop.permute.xlu0 %792
      %794 = vrot.lane.b32.xlu0 %v789, 126
      %v795 = vpop.permute.xlu0 %794
      %vm796 = vcmask 1031168
      %v797 = vsel %vm796, %v791, %v793
      %v798 = vsel %vm796, %v793, %v795
      %v800 = vsel %vm250, %v781, 0
      %v802 = vsel %vm254, %v797, 0
      %v804 = vsel %vm254, %v798, 0
      %v806 = vsel %vm254, %v795, 0
      %808 = vmatpush.msra.mxu0 0.0
      %809 = vmatpush.msra.mxu0 0.0
      %810 = vmatpush.msra.mxu0 0.0
      %811 = vmatpush.msra.mxu0 0.0
      %812 = vmatpush.msra.mxu0 0.0
      %813 = vmatpush.msra.mxu0 0.0
      %814 = vmatpush.msra.mxu0 0.0
      %815 = vmatpush.msra.mxu0 0.0
      %816 = vmatpush.msra.mxu0 0.0
      %817 = vmatpush.msra.mxu0 0.0
      %818 = vmatpush.msra.mxu0 0.0
      %819 = vmatpush.msra.mxu0 0.0
      %820 = vmatpush.msra.mxu0 0.0
      %821 = vmatpush.msra.mxu0 0.0
      %822 = vmatpush.msra.mxu0 0.0
      %823 = vmatpush.msra.mxu0 %v802
      %824 = vmatmul.f32.gmra.mxu0 %v800
      %v825 = vpop.f32.mrf.mxu0
      %v826 = vadd.f32 0.0, %v825
      %827 = vdwg.mxu0
      %828 = vmatpush.msra.mxu0 0.0
      %829 = vmatpush.msra.mxu0 0.0
      %830 = vmatpush.msra.mxu0 0.0
      %831 = vmatpush.msra.mxu0 0.0
      %832 = vmatpush.msra.mxu0 0.0
      %833 = vmatpush.msra.mxu0 0.0
      %834 = vmatpush.msra.mxu0 0.0
      %835 = vmatpush.msra.mxu0 0.0
      %836 = vmatpush.msra.mxu0 0.0
      %837 = vmatpush.msra.mxu0 0.0
      %838 = vmatpush.msra.mxu0 0.0
      %839 = vmatpush.msra.mxu0 0.0
      %840 = vmatpush.msra.mxu0 0.0
      %841 = vmatpush.msra.mxu0 0.0
      %842 = vmatpush.msra.mxu0 0.0
      %843 = vmatpush.msra.mxu0 %v804
      %844 = vmatmul.f32.gmra.mxu0 %v800
      %v845 = vpop.f32.mrf.mxu0
      %v846 = vadd.f32 0.0, %v845
      %847 = vdwg.mxu0
      %848 = vmatpush.msra.mxu0 0.0
      %849 = vmatpush.msra.mxu0 0.0
      %850 = vmatpush.msra.mxu0 0.0
      %851 = vmatpush.msra.mxu0 0.0
      %852 = vmatpush.msra.mxu0 0.0
      %853 = vmatpush.msra.mxu0 0.0
      %854 = vmatpush.msra.mxu0 0.0
      %855 = vmatpush.msra.mxu0 0.0
      %856 = vmatpush.msra.mxu0 0.0
      %857 = vmatpush.msra.mxu0 0.0
      %858 = vmatpush.msra.mxu0 0.0
      %859 = vmatpush.msra.mxu0 0.0
      %860 = vmatpush.msra.mxu0 0.0
      %861 = vmatpush.msra.mxu0 0.0
      %862 = vmatpush.msra.mxu0 0.0
      %863 = vmatpush.msra.mxu0 %v806
      %864 = vmatmul.f32.gmra.mxu0 %v800
      %v865 = vpop.f32.mrf.mxu0
      %v866 = vadd.f32 0.0, %v865
      %867 = vdwg.mxu0
      %v868 = vadd.f32 %v736, %v826
      %v869 = vadd.f32 %v756, %v846
      %v870 = vadd.f32 %v776, %v866
      %v871 = vld [vmem:[%s209] sm:$0xff]
      %v872 = vld [vmem:[%s209 + $0x8] sm:$0xf]
      %s873 = scalar_lea.vmem %s213, 56
      %v874 = vld [vmem:[%s873] sm:$0xff]
      %877 = vst [vmem:[#allocation1] ss:$2 sm:$0xff] %v871
      %s878 = scalar_lea.vmem [#allocation1], 16
      %879 = vst [vmem:[%s878] ss:$2 sm:$0xff] %v872
      %v880 = vld.sshfl [vmem:[#allocation1] sm:$0xff pattern:$0x75316420]
      %v881 = vld.sshfl [vmem:[#allocation1 + $0x8] sm:$0xff pattern:$0x75316420]
      %v882 = vld.sshfl [vmem:[#allocation1 + $0x10] sm:$0xff pattern:$0x75316420]
      %883 = vrot.lane.b32.xlu0 %v880, 127
      %v884 = vpop.permute.xlu0 %883
      %885 = vrot.lane.b32.xlu0 %v881, 127
      %v886 = vpop.permute.xlu0 %885
      %887 = vrot.lane.b32.xlu0 %v882, 127
      %v888 = vpop.permute.xlu0 %887
      %v889 = vsel %vm423, %v884, %v886
      %v890 = vsel %vm423, %v886, %v888
      %v892 = vsel %vm250, %v874, 0
      %v894 = vsel %vm254, %v889, 0
      %v896 = vsel %vm254, %v890, 0
      %v898 = vsel %vm254, %v888, 0
      %900 = vmatpush.msra.mxu0 0.0
      %901 = vmatpush.msra.mxu0 0.0
      %902 = vmatpush.msra.mxu0 0.0
      %903 = vmatpush.msra.mxu0 0.0
      %904 = vmatpush.msra.mxu0 0.0
      %905 = vmatpush.msra.mxu0 0.0
      %906 = vmatpush.msra.mxu0 0.0
      %907 = vmatpush.msra.mxu0 0.0
      %908 = vmatpush.msra.mxu0 0.0
      %909 = vmatpush.msra.mxu0 0.0
      %910 = vmatpush.msra.mxu0 0.0
      %911 = vmatpush.msra.mxu0 0.0
      %912 = vmatpush.msra.mxu0 0.0
      %913 = vmatpush.msra.mxu0 0.0
      %914 = vmatpush.msra.mxu0 0.0
      %915 = vmatpush.msra.mxu0 %v894
      %916 = vmatmul.f32.gmra.mxu0 %v892
      %v917 = vpop.f32.mrf.mxu0
      %v918 = vadd.f32 0.0, %v917
      %919 = vdwg.mxu0
      %920 = vmatpush.msra.mxu0 0.0
      %921 = vmatpush.msra.mxu0 0.0
      %922 = vmatpush.msra.mxu0 0.0
      %923 = vmatpush.msra.mxu0 0.0
      %924 = vmatpush.msra.mxu0 0.0
      %925 = vmatpush.msra.mxu0 0.0
      %926 = vmatpush.msra.mxu0 0.0
      %927 = vmatpush.msra.mxu0 0.0
      %928 = vmatpush.msra.mxu0 0.0
      %929 = vmatpush.msra.mxu0 0.0
      %930 = vmatpush.msra.mxu0 0.0
      %931 = vmatpush.msra.mxu0 0.0
      %932 = vmatpush.msra.mxu0 0.0
      %933 = vmatpush.msra.mxu0 0.0
      %934 = vmatpush.msra.mxu0 0.0
      %935 = vmatpush.msra.mxu0 %v896
      %936 = vmatmul.f32.gmra.mxu0 %v892
      %v937 = vpop.f32.mrf.mxu0
      %v938 = vadd.f32 0.0, %v937
      %939 = vdwg.mxu0
      %940 = vmatpush.msra.mxu0 0.0
      %941 = vmatpush.msra.mxu0 0.0
      %942 = vmatpush.msra.mxu0 0.0
      %943 = vmatpush.msra.mxu0 0.0
      %944 = vmatpush.msra.mxu0 0.0
      %945 = vmatpush.msra.mxu0 0.0
      %946 = vmatpush.msra.mxu0 0.0
      %947 = vmatpush.msra.mxu0 0.0
      %948 = vmatpush.msra.mxu0 0.0
      %949 = vmatpush.msra.mxu0 0.0
      %950 = vmatpush.msra.mxu0 0.0
      %951 = vmatpush.msra.mxu0 0.0
      %952 = vmatpush.msra.mxu0 0.0
      %953 = vmatpush.msra.mxu0 0.0
      %954 = vmatpush.msra.mxu0 0.0
      %955 = vmatpush.msra.mxu0 %v898
      %956 = vmatmul.f32.gmra.mxu0 %v892
      %v957 = vpop.f32.mrf.mxu0
      %v958 = vadd.f32 0.0, %v957
      %959 = vdwg.mxu0
      %v960 = vadd.f32 %v868, %v918
      %v961 = vadd.f32 %v869, %v938
      %v962 = vadd.f32 %v870, %v958
      %v963 = vadd.f32 %v960, %v585
      %v964 = vadd.f32 %v961, %v585
      %v965 = vadd.f32 %v962, %v585
      %vm966 = vcmp.ge.f32.partialorder %v963, 0.0
      %vm967 = vcmp.ge.f32.partialorder %v964, 0.0
      %vm968 = vcmp.ge.f32.partialorder %v965, 0.0
      %v969 = vmul.f32 %v963, 0.01
      %v970 = vmul.f32 %v964, 0.01
      %v971 = vmul.f32 %v965, 0.01
      %v972 = vsel %vm966, %v963, %v969
      %v973 = vsel %vm967, %v964, %v970
      %v974 = vsel %vm968, %v965, %v971
      %s975 = scalar_lea.vmem %s226, 24
      %976 = vst [vmem:[%s975] sm:$0xff] %v972
      %977 = vst [vmem:[%s975 + $0x8] sm:$0xff] %v973
      %978 = vst.msk [vmem:[%s975 + $0x10] sm:$0xff] %vm601, %v974
      %v979 = vld [vmem:[%s209] sm:$0xff]
      %v980 = vld [vmem:[%s209 + $0x8] sm:$0xf]
      %s981 = scalar_lea.vmem %s213, 64
      %v982 = vld [vmem:[%s981] sm:$0xff]
      %s983 = scalar_lea.vmem %s213, 72
      %v984 = vld [vmem:[%s983] sm:$0xff]
      %987 = vst [vmem:[#allocation1] ss:$2 sm:$0xff] %v979
      %s988 = scalar_lea.vmem [#allocation1], 16
      %989 = vst [vmem:[%s988] ss:$2 sm:$0xff] %v980
      %v990 = vld.sshfl [vmem:[#allocation1] sm:$0xff pattern:$0x75316420]
      %v991 = vld.sshfl [vmem:[#allocation1 + $0x8] sm:$0xff pattern:$0x75316420]
      %v992 = vld.sshfl [vmem:[#allocation1 + $0x10] sm:$0xff pattern:$0x75316420]
      %993 = vrot.lane.b32.xlu0 %v990, 92
      %v994 = vpop.permute.xlu0 %993
      %995 = vrot.lane.b32.xlu0 %v991, 92
      %v996 = vpop.permute.xlu0 %995
      %997 = vrot.lane.b32.xlu0 %v992, 92
      %v998 = vpop.permute.xlu0 %997
      %vm999 = vcmask 752640
      %v1000 = vsel %vm999, %v994, %v996
      %v1001 = vsel %vm999, %v996, %v998
      %v1003 = vsel %vm250, %v984, 0
      %v1005 = vsel %vm254, %v1000, 0
      %v1007 = vsel %vm254, %v1001, 0
      %v1009 = vsel %vm254, %v998, 0
      %1011 = vmatpush.msra.mxu0 0.0
      %1012 = vmatpush.msra.mxu0 0.0
      %1013 = vmatpush.msra.mxu0 0.0
      %1014 = vmatpush.msra.mxu0 0.0
      %1015 = vmatpush.msra.mxu0 0.0
      %1016 = vmatpush.msra.mxu0 0.0
      %1017 = vmatpush.msra.mxu0 0.0
      %1018 = vmatpush.msra.mxu0 0.0
      %1019 = vmatpush.msra.mxu0 0.0
      %1020 = vmatpush.msra.mxu0 0.0
      %1021 = vmatpush.msra.mxu0 0.0
      %1022 = vmatpush.msra.mxu0 0.0
      %1023 = vmatpush.msra.mxu0 0.0
      %1024 = vmatpush.msra.mxu0 0.0
      %1025 = vmatpush.msra.mxu0 0.0
      %1026 = vmatpush.msra.mxu0 %v1005
      %1027 = vmatmul.f32.gmra.mxu0 %v1003
      %v1028 = vpop.f32.mrf.mxu0
      %v1029 = vadd.f32 0.0, %v1028
      %1030 = vdwg.mxu0
      %1031 = vmatpush.msra.mxu0 0.0
      %1032 = vmatpush.msra.mxu0 0.0
      %1033 = vmatpush.msra.mxu0 0.0
      %1034 = vmatpush.msra.mxu0 0.0
      %1035 = vmatpush.msra.mxu0 0.0
      %1036 = vmatpush.msra.mxu0 0.0
      %1037 = vmatpush.msra.mxu0 0.0
      %1038 = vmatpush.msra.mxu0 0.0
      %1039 = vmatpush.msra.mxu0 0.0
      %1040 = vmatpush.msra.mxu0 0.0
      %1041 = vmatpush.msra.mxu0 0.0
      %1042 = vmatpush.msra.mxu0 0.0
      %1043 = vmatpush.msra.mxu0 0.0
      %1044 = vmatpush.msra.mxu0 0.0
      %1045 = vmatpush.msra.mxu0 0.0
      %1046 = vmatpush.msra.mxu0 %v1007
      %1047 = vmatmul.f32.gmra.mxu0 %v1003
      %v1048 = vpop.f32.mrf.mxu0
      %v1049 = vadd.f32 0.0, %v1048
      %1050 = vdwg.mxu0
      %1051 = vmatpush.msra.mxu0 0.0
      %1052 = vmatpush.msra.mxu0 0.0
      %1053 = vmatpush.msra.mxu0 0.0
      %1054 = vmatpush.msra.mxu0 0.0
      %1055 = vmatpush.msra.mxu0 0.0
      %1056 = vmatpush.msra.mxu0 0.0
      %1057 = vmatpush.msra.mxu0 0.0
      %1058 = vmatpush.msra.mxu0 0.0
      %1059 = vmatpush.msra.mxu0 0.0
      %1060 = vmatpush.msra.mxu0 0.0
      %1061 = vmatpush.msra.mxu0 0.0
      %1062 = vmatpush.msra.mxu0 0.0
      %1063 = vmatpush.msra.mxu0 0.0
      %1064 = vmatpush.msra.mxu0 0.0
      %1065 = vmatpush.msra.mxu0 0.0
      %1066 = vmatpush.msra.mxu0 %v1009
      %1067 = vmatmul.f32.gmra.mxu0 %v1003
      %v1068 = vpop.f32.mrf.mxu0
      %v1069 = vadd.f32 0.0, %v1068
      %1070 = vdwg.mxu0
      %1071 = vst [vmem:[#allocation1] ss:$2 sm:$0xff] %v979
      %s1072 = scalar_lea.vmem [#allocation1], 16
      %1073 = vst [vmem:[%s1072] ss:$2 sm:$0xff] %v980
      %v1074 = vld.sshfl [vmem:[#allocation1] sm:$0xff pattern:$0x75316420]
      %v1075 = vld.sshfl [vmem:[#allocation1 + $0x8] sm:$0xff pattern:$0x75316420]
      %v1076 = vld.sshfl [vmem:[#allocation1 + $0x10] sm:$0xff pattern:$0x75316420]
      %1077 = vrot.lane.b32.xlu0 %v1074, 91
      %v1078 = vpop.permute.xlu0 %1077
      %1079 = vrot.lane.b32.xlu0 %v1075, 91
      %v1080 = vpop.permute.xlu0 %1079
      %1081 = vrot.lane.b32.xlu0 %v1076, 91
      %v1082 = vpop.permute.xlu0 %1081
      %vm1083 = vcmask 744448
      %v1084 = vsel %vm1083, %v1078, %v1080
      %v1085 = vsel %vm1083, %v1080, %v1082
      %v1087 = vsel %vm250, %v982, 0
      %v1089 = vsel %vm254, %v1084, 0
      %v1091 = vsel %vm254, %v1085, 0
      %v1093 = vsel %vm254, %v1082, 0
      %1095 = vmatpush.msra.mxu0 0.0
      %1096 = vmatpush.msra.mxu0 0.0
      %1097 = vmatpush.msra.mxu0 0.0
      %1098 = vmatpush.msra.mxu0 0.0
      %1099 = vmatpush.msra.mxu0 0.0
      %1100 = vmatpush.msra.mxu0 0.0
      %1101 = vmatpush.msra.mxu0 0.0
      %1102 = vmatpush.msra.mxu0 0.0
      %1103 = vmatpush.msra.mxu0 0.0
      %1104 = vmatpush.msra.mxu0 0.0
      %1105 = vmatpush.msra.mxu0 0.0
      %1106 = vmatpush.msra.mxu0 0.0
      %1107 = vmatpush.msra.mxu0 0.0
      %1108 = vmatpush.msra.mxu0 0.0
      %1109 = vmatpush.msra.mxu0 0.0
      %1110 = vmatpush.msra.mxu0 %v1089
      %1111 = vmatmul.f32.gmra.mxu0 %v1087
      %v1112 = vpop.f32.mrf.mxu0
      %v1113 = vadd.f32 %v1029, %v1112
      %1114 = vdwg.mxu0
      %1115 = vmatpush.msra.mxu0 0.0
      %1116 = vmatpush.msra.mxu0 0.0
      %1117 = vmatpush.msra.mxu0 0.0
      %1118 = vmatpush.msra.mxu0 0.0
      %1119 = vmatpush.msra.mxu0 0.0
      %1120 = vmatpush.msra.mxu0 0.0
      %1121 = vmatpush.msra.mxu0 0.0
      %1122 = vmatpush.msra.mxu0 0.0
      %1123 = vmatpush.msra.mxu0 0.0
      %1124 = vmatpush.msra.mxu0 0.0
      %1125 = vmatpush.msra.mxu0 0.0
      %1126 = vmatpush.msra.mxu0 0.0
      %1127 = vmatpush.msra.mxu0 0.0
      %1128 = vmatpush.msra.mxu0 0.0
      %1129 = vmatpush.msra.mxu0 0.0
      %1130 = vmatpush.msra.mxu0 %v1091
      %1131 = vmatmul.f32.gmra.mxu0 %v1087
      %v1132 = vpop.f32.mrf.mxu0
      %v1133 = vadd.f32 %v1049, %v1132
      %1134 = vdwg.mxu0
      %1135 = vmatpush.msra.mxu0 0.0
      %1136 = vmatpush.msra.mxu0 0.0
      %1137 = vmatpush.msra.mxu0 0.0
      %1138 = vmatpush.msra.mxu0 0.0
      %1139 = vmatpush.msra.mxu0 0.0
      %1140 = vmatpush.msra.mxu0 0.0
      %1141 = vmatpush.msra.mxu0 0.0
      %1142 = vmatpush.msra.mxu0 0.0
      %1143 = vmatpush.msra.mxu0 0.0
      %1144 = vmatpush.msra.mxu0 0.0
      %1145 = vmatpush.msra.mxu0 0.0
      %1146 = vmatpush.msra.mxu0 0.0
      %1147 = vmatpush.msra.mxu0 0.0
      %1148 = vmatpush.msra.mxu0 0.0
      %1149 = vmatpush.msra.mxu0 0.0
      %1150 = vmatpush.msra.mxu0 %v1093
      %1151 = vmatmul.f32.gmra.mxu0 %v1087
      %v1152 = vpop.f32.mrf.mxu0
      %v1153 = vadd.f32 %v1069, %v1152
      %1154 = vdwg.mxu0
      %v1155 = vld [vmem:[%s209] sm:$0xff]
      %v1156 = vld [vmem:[%s209 + $0x8] sm:$0xf]
      %s1157 = scalar_lea.vmem %s213, 80
      %v1158 = vld [vmem:[%s1157] sm:$0xff]
      %1161 = vst [vmem:[#allocation1] ss:$2 sm:$0xff] %v1155
      %s1162 = scalar_lea.vmem [#allocation1], 16
      %1163 = vst [vmem:[%s1162] ss:$2 sm:$0xff] %v1156
      %v1164 = vld.sshfl [vmem:[#allocation1] sm:$0xff pattern:$0x75316420]
      %v1165 = vld.sshfl [vmem:[#allocation1 + $0x8] sm:$0xff pattern:$0x75316420]
      %v1166 = vld.sshfl [vmem:[#allocation1 + $0x10] sm:$0xff pattern:$0x75316420]
      %1167 = vrot.lane.b32.xlu0 %v1164, 109
      %v1168 = vpop.permute.xlu0 %1167
      %1169 = vrot.lane.b32.xlu0 %v1165, 109
      %v1170 = vpop.permute.xlu0 %1169
      %1171 = vrot.lane.b32.xlu0 %v1166, 109
      %v1172 = vpop.permute.xlu0 %1171
      %v1173 = vsel %vm333, %v1168, %v1170
      %v1174 = vsel %vm333, %v1170, %v1172
      %v1176 = vsel %vm250, %v1158, 0
      %v1178 = vsel %vm254, %v1173, 0
      %v1180 = vsel %vm254, %v1174, 0
      %v1182 = vsel %vm254, %v1172, 0
      %1184 = vmatpush.msra.mxu0 0.0
      %1185 = vmatpush.msra.mxu0 0.0
      %1186 = vmatpush.msra.mxu0 0.0
      %1187 = vmatpush.msra.mxu0 0.0
      %1188 = vmatpush.msra.mxu0 0.0
      %1189 = vmatpush.msra.mxu0 0.0
      %1190 = vmatpush.msra.mxu0 0.0
      %1191 = vmatpush.msra.mxu0 0.0
      %1192 = vmatpush.msra.mxu0 0.0
      %1193 = vmatpush.msra.mxu0 0.0
      %1194 = vmatpush.msra.mxu0 0.0
      %1195 = vmatpush.msra.mxu0 0.0
      %1196 = vmatpush.msra.mxu0 0.0
      %1197 = vmatpush.msra.mxu0 0.0
      %1198 = vmatpush.msra.mxu0 0.0
      %1199 = vmatpush.msra.mxu0 %v1178
      %1200 = vmatmul.f32.gmra.mxu0 %v1176
      %v1201 = vpop.f32.mrf.mxu0
      %v1202 = vadd.f32 0.0, %v1201
      %1203 = vdwg.mxu0
      %1204 = vmatpush.msra.mxu0 0.0
      %1205 = vmatpush.msra.mxu0 0.0
      %1206 = vmatpush.msra.mxu0 0.0
      %1207 = vmatpush.msra.mxu0 0.0
      %1208 = vmatpush.msra.mxu0 0.0
      %1209 = vmatpush.msra.mxu0 0.0
      %1210 = vmatpush.msra.mxu0 0.0
      %1211 = vmatpush.msra.mxu0 0.0
      %1212 = vmatpush.msra.mxu0 0.0
      %1213 = vmatpush.msra.mxu0 0.0
      %1214 = vmatpush.msra.mxu0 0.0
      %1215 = vmatpush.msra.mxu0 0.0
      %1216 = vmatpush.msra.mxu0 0.0
      %1217 = vmatpush.msra.mxu0 0.0
      %1218 = vmatpush.msra.mxu0 0.0
      %1219 = vmatpush.msra.mxu0 %v1180
      %1220 = vmatmul.f32.gmra.mxu0 %v1176
      %v1221 = vpop.f32.mrf.mxu0
      %v1222 = vadd.f32 0.0, %v1221
      %1223 = vdwg.mxu0
      %1224 = vmatpush.msra.mxu0 0.0
      %1225 = vmatpush.msra.mxu0 0.0
      %1226 = vmatpush.msra.mxu0 0.0
      %1227 = vmatpush.msra.mxu0 0.0
      %1228 = vmatpush.msra.mxu0 0.0
      %1229 = vmatpush.msra.mxu0 0.0
      %1230 = vmatpush.msra.mxu0 0.0
      %1231 = vmatpush.msra.mxu0 0.0
      %1232 = vmatpush.msra.mxu0 0.0
      %1233 = vmatpush.msra.mxu0 0.0
      %1234 = vmatpush.msra.mxu0 0.0
      %1235 = vmatpush.msra.mxu0 0.0
      %1236 = vmatpush.msra.mxu0 0.0
      %1237 = vmatpush.msra.mxu0 0.0
      %1238 = vmatpush.msra.mxu0 0.0
      %1239 = vmatpush.msra.mxu0 %v1182
      %1240 = vmatmul.f32.gmra.mxu0 %v1176
      %v1241 = vpop.f32.mrf.mxu0
      %v1242 = vadd.f32 0.0, %v1241
      %1243 = vdwg.mxu0
      %v1244 = vadd.f32 %v1113, %v1202
      %v1245 = vadd.f32 %v1133, %v1222
      %v1246 = vadd.f32 %v1153, %v1242
      %v1247 = vld [vmem:[%s209] sm:$0xff]
      %v1248 = vld [vmem:[%s209 + $0x8] sm:$0xf]
      %s1249 = scalar_lea.vmem %s213, 88
      %v1250 = vld [vmem:[%s1249] sm:$0xff]
      %1253 = vst [vmem:[#allocation1] ss:$2 sm:$0xff] %v1247
      %s1254 = scalar_lea.vmem [#allocation1], 16
      %1255 = vst [vmem:[%s1254] ss:$2 sm:$0xff] %v1248
      %v1256 = vld.sshfl [vmem:[#allocation1] sm:$0xff pattern:$0x75316420]
      %v1257 = vld.sshfl [vmem:[#allocation1 + $0x8] sm:$0xff pattern:$0x75316420]
      %v1258 = vld.sshfl [vmem:[#allocation1 + $0x10] sm:$0xff pattern:$0x75316420]
      %1259 = vrot.lane.b32.xlu0 %v1256, 110
      %v1260 = vpop.permute.xlu0 %1259
      %1261 = vrot.lane.b32.xlu0 %v1257, 110
      %v1262 = vpop.permute.xlu0 %1261
      %1263 = vrot.lane.b32.xlu0 %v1258, 110
      %v1264 = vpop.permute.xlu0 %1263
      %v1265 = vsel %vm247, %v1260, %v1262
      %v1266 = vsel %vm247, %v1262, %v1264
      %v1268 = vsel %vm250, %v1250, 0
      %v1270 = vsel %vm254, %v1265, 0
      %v1272 = vsel %vm254, %v1266, 0
      %v1274 = vsel %vm254, %v1264, 0
      %1276 = vmatpush.msra.mxu0 0.0
      %1277 = vmatpush.msra.mxu0 0.0
      %1278 = vmatpush.msra.mxu0 0.0
      %1279 = vmatpush.msra.mxu0 0.0
      %1280 = vmatpush.msra.mxu0 0.0
      %1281 = vmatpush.msra.mxu0 0.0
      %1282 = vmatpush.msra.mxu0 0.0
      %1283 = vmatpush.msra.mxu0 0.0
      %1284 = vmatpush.msra.mxu0 0.0
      %1285 = vmatpush.msra.mxu0 0.0
      %1286 = vmatpush.msra.mxu0 0.0
      %1287 = vmatpush.msra.mxu0 0.0
      %1288 = vmatpush.msra.mxu0 0.0
      %1289 = vmatpush.msra.mxu0 0.0
      %1290 = vmatpush.msra.mxu0 0.0
      %1291 = vmatpush.msra.mxu0 %v1270
      %1292 = vmatmul.f32.gmra.mxu0 %v1268
      %v1293 = vpop.f32.mrf.mxu0
      %v1294 = vadd.f32 0.0, %v1293
      %1295 = vdwg.mxu0
      %1296 = vmatpush.msra.mxu0 0.0
      %1297 = vmatpush.msra.mxu0 0.0
      %1298 = vmatpush.msra.mxu0 0.0
      %1299 = vmatpush.msra.mxu0 0.0
      %1300 = vmatpush.msra.mxu0 0.0
      %1301 = vmatpush.msra.mxu0 0.0
      %1302 = vmatpush.msra.mxu0 0.0
      %1303 = vmatpush.msra.mxu0 0.0
      %1304 = vmatpush.msra.mxu0 0.0
      %1305 = vmatpush.msra.mxu0 0.0
      %1306 = vmatpush.msra.mxu0 0.0
      %1307 = vmatpush.msra.mxu0 0.0
      %1308 = vmatpush.msra.mxu0 0.0
      %1309 = vmatpush.msra.mxu0 0.0
      %1310 = vmatpush.msra.mxu0 0.0
      %1311 = vmatpush.msra.mxu0 %v1272
      %1312 = vmatmul.f32.gmra.mxu0 %v1268
      %v1313 = vpop.f32.mrf.mxu0
      %v1314 = vadd.f32 0.0, %v1313
      %1315 = vdwg.mxu0
      %1316 = vmatpush.msra.mxu0 0.0
      %1317 = vmatpush.msra.mxu0 0.0
      %1318 = vmatpush.msra.mxu0 0.0
      %1319 = vmatpush.msra.mxu0 0.0
      %1320 = vmatpush.msra.mxu0 0.0
      %1321 = vmatpush.msra.mxu0 0.0
      %1322 = vmatpush.msra.mxu0 0.0
      %1323 = vmatpush.msra.mxu0 0.0
      %1324 = vmatpush.msra.mxu0 0.0
      %1325 = vmatpush.msra.mxu0 0.0
      %1326 = vmatpush.msra.mxu0 0.0
      %1327 = vmatpush.msra.mxu0 0.0
      %1328 = vmatpush.msra.mxu0 0.0
      %1329 = vmatpush.msra.mxu0 0.0
      %1330 = vmatpush.msra.mxu0 0.0
      %1331 = vmatpush.msra.mxu0 %v1274
      %1332 = vmatmul.f32.gmra.mxu0 %v1268
      %v1333 = vpop.f32.mrf.mxu0
      %v1334 = vadd.f32 0.0, %v1333
      %1335 = vdwg.mxu0
      %v1336 = vadd.f32 %v1244, %v1294
      %v1337 = vadd.f32 %v1245, %v1314
      %v1338 = vadd.f32 %v1246, %v1334
      %v1339 = vadd.f32 %v1336, %v585
      %v1340 = vadd.f32 %v1337, %v585
      %v1341 = vadd.f32 %v1338, %v585
      %vm1342 = vcmp.ge.f32.partialorder %v1339, 0.0
      %vm1343 = vcmp.ge.f32.partialorder %v1340, 0.0
      %vm1344 = vcmp.ge.f32.partialorder %v1341, 0.0
      %v1345 = vmul.f32 %v1339, 0.01
      %v1346 = vmul.f32 %v1340, 0.01
      %v1347 = vmul.f32 %v1341, 0.01
      %v1348 = vsel %vm1342, %v1339, %v1345
      %v1349 = vsel %vm1343, %v1340, %v1346
      %v1350 = vsel %vm1344, %v1341, %v1347
      %s1351 = scalar_lea.vmem %s226, 48
      %1352 = vst [vmem:[%s1351] sm:$0xff] %v1348
      %1353 = vst [vmem:[%s1351 + $0x8] sm:$0xff] %v1349
      %1354 = vst.msk [vmem:[%s1351 + $0x10] sm:$0xff] %vm601, %v1350
      %v1355 = vld [vmem:[%s209] sm:$0xff]
      %v1356 = vld [vmem:[%s209 + $0x8] sm:$0xf]
      %s1357 = scalar_lea.vmem %s213, 96
      %v1358 = vld [vmem:[%s1357] sm:$0xff]
      %s1359 = scalar_lea.vmem %s213, 104
      %v1360 = vld [vmem:[%s1359] sm:$0xff]
      %1363 = vst [vmem:[#allocation1] ss:$2 sm:$0xff] %v1355
      %s1364 = scalar_lea.vmem [#allocation1], 16
      %1365 = vst [vmem:[%s1364] ss:$2 sm:$0xff] %v1356
      %v1366 = vld.sshfl [vmem:[#allocation1] sm:$0xff pattern:$0x75316420]
      %v1367 = vld.sshfl [vmem:[#allocation1 + $0x8] sm:$0xff pattern:$0x75316420]
      %v1368 = vld.sshfl [vmem:[#allocation1 + $0x10] sm:$0xff pattern:$0x75316420]
      %1369 = vrot.lane.b32.xlu0 %v1366, 91
      %v1370 = vpop.permute.xlu0 %1369
      %1371 = vrot.lane.b32.xlu0 %v1367, 91
      %v1372 = vpop.permute.xlu0 %1371
      %1373 = vrot.lane.b32.xlu0 %v1368, 91
      %v1374 = vpop.permute.xlu0 %1373
      %v1375 = vsel %vm1083, %v1370, %v1372
      %v1376 = vsel %vm1083, %v1372, %v1374
      %v1378 = vsel %vm250, %v1360, 0
      %v1380 = vsel %vm254, %v1375, 0
      %v1382 = vsel %vm254, %v1376, 0
      %v1384 = vsel %vm254, %v1374, 0
      %1386 = vmatpush.msra.mxu0 0.0
      %1387 = vmatpush.msra.mxu0 0.0
      %1388 = vmatpush.msra.mxu0 0.0
      %1389 = vmatpush.msra.mxu0 0.0
      %1390 = vmatpush.msra.mxu0 0.0
      %1391 = vmatpush.msra.mxu0 0.0
      %1392 = vmatpush.msra.mxu0 0.0
      %1393 = vmatpush.msra.mxu0 0.0
      %1394 = vmatpush.msra.mxu0 0.0
      %1395 = vmatpush.msra.mxu0 0.0
      %1396 = vmatpush.msra.mxu0 0.0
      %1397 = vmatpush.msra.mxu0 0.0
      %1398 = vmatpush.msra.mxu0 0.0
      %1399 = vmatpush.msra.mxu0 0.0
      %1400 = vmatpush.msra.mxu0 0.0
      %1401 = vmatpush.msra.mxu0 %v1380
      %1402 = vmatmul.f32.gmra.mxu0 %v1378
      %v1403 = vpop.f32.mrf.mxu0
      %v1404 = vadd.f32 0.0, %v1403
      %1405 = vdwg.mxu0
      %1406 = vmatpush.msra.mxu0 0.0
      %1407 = vmatpush.msra.mxu0 0.0
      %1408 = vmatpush.msra.mxu0 0.0
      %1409 = vmatpush.msra.mxu0 0.0
      %1410 = vmatpush.msra.mxu0 0.0
      %1411 = vmatpush.msra.mxu0 0.0
      %1412 = vmatpush.msra.mxu0 0.0
      %1413 = vmatpush.msra.mxu0 0.0
      %1414 = vmatpush.msra.mxu0 0.0
      %1415 = vmatpush.msra.mxu0 0.0
      %1416 = vmatpush.msra.mxu0 0.0
      %1417 = vmatpush.msra.mxu0 0.0
      %1418 = vmatpush.msra.mxu0 0.0
      %1419 = vmatpush.msra.mxu0 0.0
      %1420 = vmatpush.msra.mxu0 0.0
      %1421 = vmatpush.msra.mxu0 %v1382
      %1422 = vmatmul.f32.gmra.mxu0 %v1378
      %v1423 = vpop.f32.mrf.mxu0
      %v1424 = vadd.f32 0.0, %v1423
      %1425 = vdwg.mxu0
      %1426 = vmatpush.msra.mxu0 0.0
      %1427 = vmatpush.msra.mxu0 0.0
      %1428 = vmatpush.msra.mxu0 0.0
      %1429 = vmatpush.msra.mxu0 0.0
      %1430 = vmatpush.msra.mxu0 0.0
      %1431 = vmatpush.msra.mxu0 0.0
      %1432 = vmatpush.msra.mxu0 0.0
      %1433 = vmatpush.msra.mxu0 0.0
      %1434 = vmatpush.msra.mxu0 0.0
      %1435 = vmatpush.msra.mxu0 0.0
      %1436 = vmatpush.msra.mxu0 0.0
      %1437 = vmatpush.msra.mxu0 0.0
      %1438 = vmatpush.msra.mxu0 0.0
      %1439 = vmatpush.msra.mxu0 0.0
      %1440 = vmatpush.msra.mxu0 0.0
      %1441 = vmatpush.msra.mxu0 %v1384
      %1442 = vmatmul.f32.gmra.mxu0 %v1378
      %v1443 = vpop.f32.mrf.mxu0
      %v1444 = vadd.f32 0.0, %v1443
      %1445 = vdwg.mxu0
      %1446 = vst [vmem:[#allocation1] ss:$2 sm:$0xff] %v1355
      %s1447 = scalar_lea.vmem [#allocation1], 16
      %1448 = vst [vmem:[%s1447] ss:$2 sm:$0xff] %v1356
      %v1449 = vld.sshfl [vmem:[#allocation1] sm:$0xff pattern:$0x75316420]
      %v1450 = vld.sshfl [vmem:[#allocation1 + $0x8] sm:$0xff pattern:$0x75316420]
      %v1451 = vld.sshfl [vmem:[#allocation1 + $0x10] sm:$0xff pattern:$0x75316420]
      %1452 = vrot.lane.b32.xlu0 %v1449, 90
      %v1453 = vpop.permute.xlu0 %1452
      %1454 = vrot.lane.b32.xlu0 %v1450, 90
      %v1455 = vpop.permute.xlu0 %1454
      %1456 = vrot.lane.b32.xlu0 %v1451, 90
      %v1457 = vpop.permute.xlu0 %1456
      %vm1458 = vcmask 736256
      %v1459 = vsel %vm1458, %v1453, %v1455
      %v1460 = vsel %vm1458, %v1455, %v1457
      %v1462 = vsel %vm250, %v1358, 0
      %v1464 = vsel %vm254, %v1459, 0
      %v1466 = vsel %vm254, %v1460, 0
      %v1468 = vsel %vm254, %v1457, 0
      %1470 = vmatpush.msra.mxu0 0.0
      %1471 = vmatpush.msra.mxu0 0.0
      %1472 = vmatpush.msra.mxu0 0.0
      %1473 = vmatpush.msra.mxu0 0.0
      %1474 = vmatpush.msra.mxu0 0.0
      %1475 = vmatpush.msra.mxu0 0.0
      %1476 = vmatpush.msra.mxu0 0.0
      %1477 = vmatpush.msra.mxu0 0.0
      %1478 = vmatpush.msra.mxu0 0.0
      %1479 = vmatpush.msra.mxu0 0.0
      %1480 = vmatpush.msra.mxu0 0.0
      %1481 = vmatpush.msra.mxu0 0.0
      %1482 = vmatpush.msra.mxu0 0.0
      %1483 = vmatpush.msra.mxu0 0.0
      %1484 = vmatpush.msra.mxu0 0.0
      %1485 = vmatpush.msra.mxu0 %v1464
      %1486 = vmatmul.f32.gmra.mxu0 %v1462
      %v1487 = vpop.f32.mrf.mxu0
      %v1488 = vadd.f32 %v1404, %v1487
      %1489 = vdwg.mxu0
      %1490 = vmatpush.msra.mxu0 0.0
      %1491 = vmatpush.msra.mxu0 0.0
      %1492 = vmatpush.msra.mxu0 0.0
      %1493 = vmatpush.msra.mxu0 0.0
      %1494 = vmatpush.msra.mxu0 0.0
      %1495 = vmatpush.msra.mxu0 0.0
      %1496 = vmatpush.msra.mxu0 0.0
      %1497 = vmatpush.msra.mxu0 0.0
      %1498 = vmatpush.msra.mxu0 0.0
      %1499 = vmatpush.msra.mxu0 0.0
      %1500 = vmatpush.msra.mxu0 0.0
      %1501 = vmatpush.msra.mxu0 0.0
      %1502 = vmatpush.msra.mxu0 0.0
      %1503 = vmatpush.msra.mxu0 0.0
      %1504 = vmatpush.msra.mxu0 0.0
      %1505 = vmatpush.msra.mxu0 %v1466
      %1506 = vmatmul.f32.gmra.mxu0 %v1462
      %v1507 = vpop.f32.mrf.mxu0
      %v1508 = vadd.f32 %v1424, %v1507
      %1509 = vdwg.mxu0
      %1510 = vmatpush.msra.mxu0 0.0
      %1511 = vmatpush.msra.mxu0 0.0
      %1512 = vmatpush.msra.mxu0 0.0
      %1513 = vmatpush.msra.mxu0 0.0
      %1514 = vmatpush.msra.mxu0 0.0
      %1515 = vmatpush.msra.mxu0 0.0
      %1516 = vmatpush.msra.mxu0 0.0
      %1517 = vmatpush.msra.mxu0 0.0
      %1518 = vmatpush.msra.mxu0 0.0
      %1519 = vmatpush.msra.mxu0 0.0
      %1520 = vmatpush.msra.mxu0 0.0
      %1521 = vmatpush.msra.mxu0 0.0
      %1522 = vmatpush.msra.mxu0 0.0
      %1523 = vmatpush.msra.mxu0 0.0
      %1524 = vmatpush.msra.mxu0 0.0
      %1525 = vmatpush.msra.mxu0 %v1468
      %1526 = vmatmul.f32.gmra.mxu0 %v1462
      %v1527 = vpop.f32.mrf.mxu0
      %v1528 = vadd.f32 %v1444, %v1527
      %1529 = vdwg.mxu0
      %v1530 = vld [vmem:[%s209] sm:$0xff]
      %v1531 = vld [vmem:[%s209 + $0x8] sm:$0xf]
      %s1532 = scalar_lea.vmem %s213, 112
      %v1533 = vld [vmem:[%s1532] sm:$0xff]
      %1536 = vst [vmem:[#allocation1] ss:$2 sm:$0xff] %v1530
      %s1537 = scalar_lea.vmem [#allocation1], 16
      %1538 = vst [vmem:[%s1537] ss:$2 sm:$0xff] %v1531
      %v1539 = vld.sshfl [vmem:[#allocation1] sm:$0xff pattern:$0x75316420]
      %v1540 = vld.sshfl [vmem:[#allocation1 + $0x8] sm:$0xff pattern:$0x75316420]
      %v1541 = vld.sshfl [vmem:[#allocation1 + $0x10] sm:$0xff pattern:$0x75316420]
      %1542 = vrot.lane.b32.xlu0 %v1539, 108
      %v1543 = vpop.permute.xlu0 %1542
      %1544 = vrot.lane.b32.xlu0 %v1540, 108
      %v1545 = vpop.permute.xlu0 %1544
      %1546 = vrot.lane.b32.xlu0 %v1541, 108
      %v1547 = vpop.permute.xlu0 %1546
      %v1548 = vsel %vm706, %v1543, %v1545
      %v1549 = vsel %vm706, %v1545, %v1547
      %v1551 = vsel %vm250, %v1533, 0
      %v1553 = vsel %vm254, %v1548, 0
      %v1555 = vsel %vm254, %v1549, 0
      %v1557 = vsel %vm254, %v1547, 0
      %1559 = vmatpush.msra.mxu0 0.0
      %1560 = vmatpush.msra.mxu0 0.0
      %1561 = vmatpush.msra.mxu0 0.0
      %1562 = vmatpush.msra.mxu0 0.0
      %1563 = vmatpush.msra.mxu0 0.0
      %1564 = vmatpush.msra.mxu0 0.0
      %1565 = vmatpush.msra.mxu0 0.0
      %1566 = vmatpush.msra.mxu0 0.0
      %1567 = vmatpush.msra.mxu0 0.0
      %1568 = vmatpush.msra.mxu0 0.0
      %1569 = vmatpush.msra.mxu0 0.0
      %1570 = vmatpush.msra.mxu0 0.0
      %1571 = vmatpush.msra.mxu0 0.0
      %1572 = vmatpush.msra.mxu0 0.0
      %1573 = vmatpush.msra.mxu0 0.0
      %1574 = vmatpush.msra.mxu0 %v1553
      %1575 = vmatmul.f32.gmra.mxu0 %v1551
      %v1576 = vpop.f32.mrf.mxu0
      %v1577 = vadd.f32 0.0, %v1576
      %1578 = vdwg.mxu0
      %1579 = vmatpush.msra.mxu0 0.0
      %1580 = vmatpush.msra.mxu0 0.0
      %1581 = vmatpush.msra.mxu0 0.0
      %1582 = vmatpush.msra.mxu0 0.0
      %1583 = vmatpush.msra.mxu0 0.0
      %1584 = vmatpush.msra.mxu0 0.0
      %1585 = vmatpush.msra.mxu0 0.0
      %1586 = vmatpush.msra.mxu0 0.0
      %1587 = vmatpush.msra.mxu0 0.0
      %1588 = vmatpush.msra.mxu0 0.0
      %1589 = vmatpush.msra.mxu0 0.0
      %1590 = vmatpush.msra.mxu0 0.0
      %1591 = vmatpush.msra.mxu0 0.0
      %1592 = vmatpush.msra.mxu0 0.0
      %1593 = vmatpush.msra.mxu0 0.0
      %1594 = vmatpush.msra.mxu0 %v1555
      %1595 = vmatmul.f32.gmra.mxu0 %v1551
      %v1596 = vpop.f32.mrf.mxu0
      %v1597 = vadd.f32 0.0, %v1596
      %1598 = vdwg.mxu0
      %1599 = vmatpush.msra.mxu0 0.0
      %1600 = vmatpush.msra.mxu0 0.0
      %1601 = vmatpush.msra.mxu0 0.0
      %1602 = vmatpush.msra.mxu0 0.0
      %1603 = vmatpush.msra.mxu0 0.0
      %1604 = vmatpush.msra.mxu0 0.0
      %1605 = vmatpush.msra.mxu0 0.0
      %1606 = vmatpush.msra.mxu0 0.0
      %1607 = vmatpush.msra.mxu0 0.0
      %1608 = vmatpush.msra.mxu0 0.0
      %1609 = vmatpush.msra.mxu0 0.0
      %1610 = vmatpush.msra.mxu0 0.0
      %1611 = vmatpush.msra.mxu0 0.0
      %1612 = vmatpush.msra.mxu0 0.0
      %1613 = vmatpush.msra.mxu0 0.0
      %1614 = vmatpush.msra.mxu0 %v1557
      %1615 = vmatmul.f32.gmra.mxu0 %v1551
      %v1616 = vpop.f32.mrf.mxu0
      %v1617 = vadd.f32 0.0, %v1616
      %1618 = vdwg.mxu0
      %v1619 = vadd.f32 %v1488, %v1577
      %v1620 = vadd.f32 %v1508, %v1597
      %v1621 = vadd.f32 %v1528, %v1617
      %v1622 = vld [vmem:[%s209] sm:$0xff]
      %v1623 = vld [vmem:[%s209 + $0x8] sm:$0xf]
      %s1624 = scalar_lea.vmem %s213, 120
      %v1625 = vld [vmem:[%s1624] sm:$0xff]
      %1628 = vst [vmem:[#allocation1] ss:$2 sm:$0xff] %v1622
      %s1629 = scalar_lea.vmem [#allocation1], 16
      %1630 = vst [vmem:[%s1629] ss:$2 sm:$0xff] %v1623
      %v1631 = vld.sshfl [vmem:[#allocation1] sm:$0xff pattern:$0x75316420]
      %v1632 = vld.sshfl [vmem:[#allocation1 + $0x8] sm:$0xff pattern:$0x75316420]
      %v1633 = vld.sshfl [vmem:[#allocation1 + $0x10] sm:$0xff pattern:$0x75316420]
      %1634 = vrot.lane.b32.xlu0 %v1631, 109
      %v1635 = vpop.permute.xlu0 %1634
      %1636 = vrot.lane.b32.xlu0 %v1632, 109
      %v1637 = vpop.permute.xlu0 %1636
      %1638 = vrot.lane.b32.xlu0 %v1633, 109
      %v1639 = vpop.permute.xlu0 %1638
      %v1640 = vsel %vm333, %v1635, %v1637
      %v1641 = vsel %vm333, %v1637, %v1639
      %v1643 = vsel %vm250, %v1625, 0
      %v1645 = vsel %vm254, %v1640, 0
      %v1647 = vsel %vm254, %v1641, 0
      %v1649 = vsel %vm254, %v1639, 0
      %1651 = vmatpush.msra.mxu0 0.0
      %1652 = vmatpush.msra.mxu0 0.0
      %1653 = vmatpush.msra.mxu0 0.0
      %1654 = vmatpush.msra.mxu0 0.0
      %1655 = vmatpush.msra.mxu0 0.0
      %1656 = vmatpush.msra.mxu0 0.0
      %1657 = vmatpush.msra.mxu0 0.0
      %1658 = vmatpush.msra.mxu0 0.0
      %1659 = vmatpush.msra.mxu0 0.0
      %1660 = vmatpush.msra.mxu0 0.0
      %1661 = vmatpush.msra.mxu0 0.0
      %1662 = vmatpush.msra.mxu0 0.0
      %1663 = vmatpush.msra.mxu0 0.0
      %1664 = vmatpush.msra.mxu0 0.0
      %1665 = vmatpush.msra.mxu0 0.0
      %1666 = vmatpush.msra.mxu0 %v1645
      %1667 = vmatmul.f32.gmra.mxu0 %v1643
      %v1668 = vpop.f32.mrf.mxu0
      %v1669 = vadd.f32 0.0, %v1668
      %1670 = vdwg.mxu0
      %1671 = vmatpush.msra.mxu0 0.0
      %1672 = vmatpush.msra.mxu0 0.0
      %1673 = vmatpush.msra.mxu0 0.0
      %1674 = vmatpush.msra.mxu0 0.0
      %1675 = vmatpush.msra.mxu0 0.0
      %1676 = vmatpush.msra.mxu0 0.0
      %1677 = vmatpush.msra.mxu0 0.0
      %1678 = vmatpush.msra.mxu0 0.0
      %1679 = vmatpush.msra.mxu0 0.0
      %1680 = vmatpush.msra.mxu0 0.0
      %1681 = vmatpush.msra.mxu0 0.0
      %1682 = vmatpush.msra.mxu0 0.0
      %1683 = vmatpush.msra.mxu0 0.0
      %1684 = vmatpush.msra.mxu0 0.0
      %1685 = vmatpush.msra.mxu0 0.0
      %1686 = vmatpush.msra.mxu0 %v1647
      %1687 = vmatmul.f32.gmra.mxu0 %v1643
      %v1688 = vpop.f32.mrf.mxu0
      %v1689 = vadd.f32 0.0, %v1688
      %1690 = vdwg.mxu0
      %1691 = vmatpush.msra.mxu0 0.0
      %1692 = vmatpush.msra.mxu0 0.0
      %1693 = vmatpush.msra.mxu0 0.0
      %1694 = vmatpush.msra.mxu0 0.0
      %1695 = vmatpush.msra.mxu0 0.0
      %1696 = vmatpush.msra.mxu0 0.0
      %1697 = vmatpush.msra.mxu0 0.0
      %1698 = vmatpush.msra.mxu0 0.0
      %1699 = vmatpush.msra.mxu0 0.0
      %1700 = vmatpush.msra.mxu0 0.0
      %1701 = vmatpush.msra.mxu0 0.0
      %1702 = vmatpush.msra.mxu0 0.0
      %1703 = vmatpush.msra.mxu0 0.0
      %1704 = vmatpush.msra.mxu0 0.0
      %1705 = vmatpush.msra.mxu0 0.0
      %1706 = vmatpush.msra.mxu0 %v1649
      %1707 = vmatmul.f32.gmra.mxu0 %v1643
      %v1708 = vpop.f32.mrf.mxu0
      %v1709 = vadd.f32 0.0, %v1708
      %1710 = vdwg.mxu0
      %v1711 = vadd.f32 %v1619, %v1669
      %v1712 = vadd.f32 %v1620, %v1689
      %v1713 = vadd.f32 %v1621, %v1709
      %v1714 = vadd.f32 %v1711, %v585
      %v1715 = vadd.f32 %v1712, %v585
      %v1716 = vadd.f32 %v1713, %v585
      %vm1717 = vcmp.ge.f32.partialorder %v1714, 0.0
      %vm1718 = vcmp.ge.f32.partialorder %v1715, 0.0
      %vm1719 = vcmp.ge.f32.partialorder %v1716, 0.0
      %v1720 = vmul.f32 %v1714, 0.01
      %v1721 = vmul.f32 %v1715, 0.01
      %v1722 = vmul.f32 %v1716, 0.01
      %v1723 = vsel %vm1717, %v1714, %v1720
      %v1724 = vsel %vm1718, %v1715, %v1721
      %v1725 = vsel %vm1719, %v1716, %v1722
      %s1726 = scalar_lea.vmem %s226, 72
      %1727 = vst [vmem:[%s1726] sm:$0xff] %v1723
      %1728 = vst [vmem:[%s1726 + $0x8] sm:$0xff] %v1724
      %1729 = vst.msk [vmem:[%s1726 + $0x10] sm:$0xff] %vm601, %v1725
      %p1730 = scmp.lt.s32.totalorder %s18, 1
      %s1731 = scalar_select %p1730, %s18, 1
      %p1732 = scmp.lt.s32.totalorder %s19, 0
      %s1733 = scalar_select %p1732, %s19, 0
      %s1734 = smul.addr %s1733, 3
      %s1735 = smul.addr %s1731, 12
      %s1736 = sadd.s32 %s1734, %s1735
      %s1737 = smul.addr %s1736, 8
      %s1738 = scalar_lea.vmem %s3, %s1737
      // Predicated region
      $region33: #{deconv_block_forward.1} parent=31 // pred_check
        %p1739 = pneg %p124
      $region34: #{deconv_block_forward.1} parent=31 // pred_check_branch
        %1741 = sbr.rel (%p1739) target = $region36
      $region35: #{deconv_block_forward.1} parent=31 // pred_region
        _
      $region36: #{deconv_block_forward.1} parent=31 // pred_fallthru
        _
    $region32: #{deconv_block_forward.1} parent=5 // pred_fallthru
      _
    %p1742 = scmp.le.s32.totalorder 2, %s9
    // Predicated region
    $region37: #{deconv_block_forward.1} parent=5 // pred_check
      %p1743 = pneg %p1742
    $region38: #{deconv_block_forward.1} parent=5 // pred_check_branch
      %1745 = sbr.rel (%p1743) target = $region40
    $region39: #{deconv_block_forward.1} parent=5 // pred_region
      %s1746 = ssub.s32 %s9, 2
      // Predicated region
      $region41: #{deconv_block_forward.1} parent=39 // pred_check
        %p1747 = pneg %p130
      $region42: #{deconv_block_forward.1} parent=39 // pred_check_branch
        %1749 = sbr.rel (%p1747) target = $region44
      $region43: #{deconv_block_forward.1} parent=39 // pred_region
        %p1750 = scmp.lt.s32.totalorder %s20, 1
        %s1751 = scalar_select %p1750, %s20, 1
        %p1752 = scmp.lt.s32.totalorder %s21, 0
        %s1753 = scalar_select %p1752, %s21, 0
        %s1754 = smul.addr %s1753, 3
        %s1755 = smul.addr %s1751, 12
        %s1756 = sadd.s32 %s1754, %s1755
        %s1757 = smul.addr %s1756, 8
        %s1758 = scalar_lea.vmem %s3, %s1757
      $region44: #{deconv_block_forward.1} parent=39 // pred_fallthru
        _
    $region40: #{deconv_block_forward.1} parent=5 // pred_fallthru
      _
  $region6: #{deconv_block_forward.1} parent=0 // loop_footer
    %s13 = sadd.s32 1, %s9
  $region7: #{deconv_block_forward.1} parent=0 // loop_footer_branch
    %8 = sbr.rel target = $region3
  $region8: #{deconv_block_forward.1} parent=0 // loop_exit
    _

</llo_original>
